<compile_context>
chip_gen: v5e
topology: v5e:2x2
jax: 0.10.0
libtpu: 0.0.40
codegen_flags: <defaults>
</compile_context>

<pallas_src>
import numpy as np
import jax
import jax.numpy as jnp
from jax import lax
from jax.experimental import pallas as pl
from jax.experimental.pallas import tpu as pltpu


_VMEM = pl.BlockSpec(memory_space=pltpu.MemorySpace.VMEM)


# ----------------------------------------------------------------------------
# Fused Pallas kernel: 3-layer LSTM cell chain + 5 dense layers, all in VMEM.
# ----------------------------------------------------------------------------

def _fused_forward_kernel(x_ref,
                          w0_ref, b0_ref,      # LSTM layer 0: (3, F_total, 64) bf16, (3, 1, 64) f32
                          w1_ref, b1_ref,      # LSTM layer 1: (3, 64, 64) bf16,      (3, 1, 64) f32
                          w2_ref, b2_ref,      # LSTM layer 2: (3, 64, 64) bf16,      (3, 1, 64) f32
                          wt1_ref, bt1_ref,    # time1   (64, 64) bf16, (1, 64) f32
                          wt2_ref, bt2_ref,    # time2   (64, 64) bf16, (1, 64) f32
                          wl1_ref, bl1_ref,    # linear1 (64, 64) bf16, (1, 64) f32
                          wl2_ref, bl2_ref,    # linear2 (64, 64) bf16, (1, 64) f32
                          wl3_ref, bl3_ref,    # linear3 (64, 128) bf16 (zero-padded), (1, 128) f32
                          o_ref):              # output slab (N, 128) f32; column 0 is the result

    def mm(a, w_bf16):
        # bf16 MXU operands, f32 accumulation.
        return jnp.dot(a.astype(jnp.bfloat16), w_bf16,
                       preferred_element_type=jnp.float32)

    def lstm_cell(x, w_ref, b_ref):
        # Gates stacked on the leading axis as [i, g, o]; the forget gate is
        # omitted because it only multiplies c0 == 0 (seq_len == 1).
        gi = mm(x, w_ref[0]) + b_ref[0]
        gg = mm(x, w_ref[1]) + b_ref[1]
        go = mm(x, w_ref[2]) + b_ref[2]
        c = jax.nn.sigmoid(gi) * jnp.tanh(gg)
        return jax.nn.sigmoid(go) * jnp.tanh(c)

    def leaky(v):                               # nn.LeakyReLU default slope 0.01
        return jnp.where(v > 0, v, 0.01 * v)

    x = x_ref[...]                              # (N, F_total) f32

    # --- 3-layer LSTM, seq_len = 1, zero initial state -> hn[2] ---
    # Layer 0 consumes x whole; rows outside [421, 421+L) of w0 are zero.
    h = lstm_cell(x, w0_ref, b0_ref)            # (N, 64)
    h = lstm_cell(h, w1_ref, b1_ref)
    h = lstm_cell(h, w2_ref, b2_ref)            # == hn[2]

    # --- time1 / time2 with LeakyReLU ---
    h = leaky(mm(h, wt1_ref[...]) + bt1_ref[...])
    h = leaky(mm(h, wt2_ref[...]) + bt2_ref[...])

    # --- linear1 / linear2 with ReLU, linear3 (padded to 128 lanes) ---
    y = jnp.maximum(mm(h, wl1_ref[...]) + bl1_ref[...], 0.0)
    y = jnp.maximum(mm(y, wl2_ref[...]) + bl2_ref[...], 0.0)
    o_ref[...] = mm(y, wl3_ref[...]) + bl3_ref[...]


def forward(kernel_args):
    """kernel_args = output of pack_kernel_args(); returns (N, 1) f32."""
    x_all = kernel_args[0]
    n = x_all.shape[0]
    out_pad = pl.pallas_call(
        _fused_forward_kernel,
        out_shape=jax.ShapeDtypeStruct((n, 128), jnp.float32),
        in_specs=[_VMEM] * len(kernel_args),
        out_specs=_VMEM,
    )(*kernel_args)
    return out_pad[:, :1]


# ----------------------------------------------------------------------------
# Parameters (synthetic, deterministic; PyTorch-style init, transposed layout)
# ----------------------------------------------------------------------------

def init_params(key, input_length, hidden=64):
    keys = list(jax.random.split(key, 32))
    kit = iter(keys)

    def u(shape, fan_in):
        s = 1.0 / np.sqrt(fan_in)
        return jax.random.uniform(next(kit), shape, jnp.float32, -s, s)

    p = {}

    # nn.LSTM(input_length, 64, num_layers=3): all params ~ U(-1/8, 1/8).
    # We keep only the gates that matter with h0 = c0 = 0, seq_len = 1:
    #   [input, cell(g), output]; the forget gate multiplies c0 == 0.
    def lstm_layer(fin):
        w = u((3, fin, hidden), hidden)                                  # W_ih^T per gate
        b = u((3, 1, hidden), hidden) + u((3, 1, hidden), hidden)        # b_ih + b_hh
        return w, b

    p["lstm"] = [lstm_layer(input_length), lstm_layer(hidden), lstm_layer(hidden)]

    def lin(fin, fout):
        return u((fin, fout), fin), u((1, fout), fin)                    # W^T, b

    p["time1"] = lin(hidden, 64)
    p["time2"] = lin(64, 64)
    p["linear1"] = lin(64, 64)
    p["linear2"] = lin(64, 64)
    p["linear3"] = lin(64, 1)
    return p


def pack_kernel_args(p, x_all, input_length, f_total, hidden=64):
    """One-time (outside the hot path) layout prep: zero-embed the layer-0 LSTM
    weight over the full feature axis, pad linear3 to 128 lanes, cast matmul
    weights to bf16 (biases stay f32)."""
    bf = lambda a: a.astype(jnp.bfloat16)

    (w0, b0), (w1, b1), (w2, b2) = p["lstm"]
    w0_pad = jnp.zeros((3, f_total, hidden), jnp.float32)
    w0_pad = w0_pad.at[:, 421:421 + input_length, :].set(w0)

    w3, b3 = p["linear3"]
    w3_pad = jnp.zeros((hidden, 128), jnp.float32).at[:, :1].set(w3)
    b3_pad = jnp.zeros((1, 128), jnp.float32).at[:, :1].set(b3)

    return (x_all,
            bf(w0_pad), b0, bf(w1), b1, bf(w2), b2,
            bf(p["time1"][0]), p["time1"][1],
            bf(p["time2"][0]), p["time2"][1],
            bf(p["linear1"][0]), p["linear1"][1],
            bf(p["linear2"][0]), p["linear2"][1],
            bf(w3_pad), b3_pad)


# ----------------------------------------------------------------------------
# Pure-JAX f32 reference (mirrors the PyTorch forward)
# ----------------------------------------------------------------------------

def reference_forward(p, x_all, input_length):
    PH = lax.Precision.HIGHEST
    leaky = lambda v: jnp.where(v > 0, v, 0.01 * v)

    t = x_all[:, 421:421 + input_length]        # seq_len = 1, batch = N

    def lstm(x, w, b):
        gi = jnp.dot(x, w[0], precision=PH) + b[0]
        gg = jnp.dot(x, w[1], precision=PH) + b[1]
        go = jnp.dot(x, w[2], precision=PH) + b[2]
        # full cell: c = f*c0 + i*g; c0 == 0 so the forget term vanishes
        c = jax.nn.sigmoid(gi) * jnp.tanh(gg)
        return jax.nn.sigmoid(go) * jnp.tanh(c)

    h = lstm(t, *p["lstm"][0])
    h = lstm(h, *p["lstm"][1])
    h = lstm(h, *p["lstm"][2])                  # hn[2]

    h = leaky(jnp.dot(h, p["time1"][0], precision=PH) + p["time1"][1])
    h = leaky(jnp.dot(h, p["time2"][0], precision=PH) + p["time2"][1])

    y = jnp.maximum(jnp.dot(h, p["linear1"][0], precision=PH) + p["linear1"][1], 0.0)
    y = jnp.maximum(jnp.dot(y, p["linear2"][0], precision=PH) + p["linear2"][1], 0.0)
    return jnp.dot(y, p["linear3"][0], precision=PH) + p["linear3"][1]


# ----------------------------------------------------------------------------
# Main
# ----------------------------------------------------------------------------

if __name__ == "__main__":
    N = 8                       # number of graph nodes (rows of data.x)
    input_length = 8            # LSTM input feature length
    F_total = 421 + input_length

    key = jax.random.PRNGKey(0)
    k_x, k_p = jax.random.split(key)
    x_all = jax.random.normal(k_x, (N, F_total), jnp.float32)
    # Note: edge_index is unpacked by the PyTorch forward but never consumed by
    # any layer, so the kernel takes no graph input.

    params = init_params(k_p, input_length)
    kernel_args = pack_kernel_args(params, x_all, input_length, F_total)

    out = jax.block_until_ready(forward(kernel_args))
    ref = jax.block_until_ready(reference_forward(params, x_all, input_length))

    assert out.shape == (N, 1)
    assert bool(jnp.all(jnp.isfinite(out)))
    np.testing.assert_allclose(np.asarray(out), np.asarray(ref), rtol=2e-2, atol=2e-2)

    print("KERNEL_OK")
</pallas_src>

<mosaic_0001>
module attributes {stable_mosaic.version = 11 : i64} {
  func.func @_fused_forward_kernel(%arg0: memref<8x429xf32, #tpu.memory_space<vmem>>, %arg1: memref<3x429x64xbf16, #tpu.memory_space<vmem>>, %arg2: memref<3x1x64xf32, #tpu.memory_space<vmem>>, %arg3: memref<3x64x64xbf16, #tpu.memory_space<vmem>>, %arg4: memref<3x1x64xf32, #tpu.memory_space<vmem>>, %arg5: memref<3x64x64xbf16, #tpu.memory_space<vmem>>, %arg6: memref<3x1x64xf32, #tpu.memory_space<vmem>>, %arg7: memref<64x64xbf16, #tpu.memory_space<vmem>>, %arg8: memref<1x64xf32, #tpu.memory_space<vmem>>, %arg9: memref<64x64xbf16, #tpu.memory_space<vmem>>, %arg10: memref<1x64xf32, #tpu.memory_space<vmem>>, %arg11: memref<64x64xbf16, #tpu.memory_space<vmem>>, %arg12: memref<1x64xf32, #tpu.memory_space<vmem>>, %arg13: memref<64x64xbf16, #tpu.memory_space<vmem>>, %arg14: memref<1x64xf32, #tpu.memory_space<vmem>>, %arg15: memref<64x128xbf16, #tpu.memory_space<vmem>>, %arg16: memref<1x128xf32, #tpu.memory_space<vmem>>, %arg17: memref<8x128xf32, #tpu.memory_space<vmem>>) attributes {dimension_semantics = [], scalar_prefetch = 0 : i64, scratch_operands = 0 : i64, tpu.core_type = #tpu.core_type<tc>} {
    %c0 = arith.constant 0 : index
    %c0_0 = arith.constant 0 : index
    %0 = vector.load %arg0[%c0, %c0_0] : memref<8x429xf32, #tpu.memory_space<vmem>>, vector<8x429xf32>
    %c0_1 = arith.constant 0 : index
    %c0_2 = arith.constant 0 : index
    %c0_3 = arith.constant 0 : index
    %1 = vector.load %arg1[%c0_1, %c0_2, %c0_3] : memref<3x429x64xbf16, #tpu.memory_space<vmem>>, vector<1x429x64xbf16>
    %2 = vector.shape_cast %1 : vector<1x429x64xbf16> to vector<429x64xbf16>
    %3 = arith.truncf %0 : vector<8x429xf32> to vector<8x429xbf16>
    %cst = arith.constant dense<0.000000e+00> : vector<8x64xf32>
    %4 = tpu.matmul %3, %2, %cst {dimension_numbers = #tpu.dot_dimension_numbers<[1], [0], [0], [1], [0, 0, 1, 1], [], []>} : vector<8x429xbf16>, vector<429x64xbf16>, vector<8x64xf32> -> vector<8x64xf32>
    %c0_4 = arith.constant 0 : index
    %c0_5 = arith.constant 0 : index
    %c0_6 = arith.constant 0 : index
    %5 = vector.load %arg2[%c0_4, %c0_5, %c0_6] : memref<3x1x64xf32, #tpu.memory_space<vmem>>, vector<1x1x64xf32>
    %6 = vector.shape_cast %5 : vector<1x1x64xf32> to vector<1x64xf32>
    %7 = vector.broadcast %6 : vector<1x64xf32> to vector<8x64xf32>
    %8 = arith.addf %4, %7 : vector<8x64xf32>
    %c1 = arith.constant 1 : index
    %c0_7 = arith.constant 0 : index
    %c0_8 = arith.constant 0 : index
    %9 = vector.load %arg1[%c1, %c0_7, %c0_8] : memref<3x429x64xbf16, #tpu.memory_space<vmem>>, vector<1x429x64xbf16>
    %10 = vector.shape_cast %9 : vector<1x429x64xbf16> to vector<429x64xbf16>
    %11 = arith.truncf %0 : vector<8x429xf32> to vector<8x429xbf16>
    %cst_9 = arith.constant dense<0.000000e+00> : vector<8x64xf32>
    %12 = tpu.matmul %11, %10, %cst_9 {dimension_numbers = #tpu.dot_dimension_numbers<[1], [0], [0], [1], [0, 0, 1, 1], [], []>} : vector<8x429xbf16>, vector<429x64xbf16>, vector<8x64xf32> -> vector<8x64xf32>
    %c1_10 = arith.constant 1 : index
    %c0_11 = arith.constant 0 : index
    %c0_12 = arith.constant 0 : index
    %13 = vector.load %arg2[%c1_10, %c0_11, %c0_12] : memref<3x1x64xf32, #tpu.memory_space<vmem>>, vector<1x1x64xf32>
    %14 = vector.shape_cast %13 : vector<1x1x64xf32> to vector<1x64xf32>
    %15 = vector.broadcast %14 : vector<1x64xf32> to vector<8x64xf32>
    %16 = arith.addf %12, %15 : vector<8x64xf32>
    %c2 = arith.constant 2 : index
    %c0_13 = arith.constant 0 : index
    %c0_14 = arith.constant 0 : index
    %17 = vector.load %arg1[%c2, %c0_13, %c0_14] : memref<3x429x64xbf16, #tpu.memory_space<vmem>>, vector<1x429x64xbf16>
    %18 = vector.shape_cast %17 : vector<1x429x64xbf16> to vector<429x64xbf16>
    %19 = arith.truncf %0 : vector<8x429xf32> to vector<8x429xbf16>
    %cst_15 = arith.constant dense<0.000000e+00> : vector<8x64xf32>
    %20 = tpu.matmul %19, %18, %cst_15 {dimension_numbers = #tpu.dot_dimension_numbers<[1], [0], [0], [1], [0, 0, 1, 1], [], []>} : vector<8x429xbf16>, vector<429x64xbf16>, vector<8x64xf32> -> vector<8x64xf32>
    %c2_16 = arith.constant 2 : index
    %c0_17 = arith.constant 0 : index
    %c0_18 = arith.constant 0 : index
    %21 = vector.load %arg2[%c2_16, %c0_17, %c0_18] : memref<3x1x64xf32, #tpu.memory_space<vmem>>, vector<1x1x64xf32>
    %22 = vector.shape_cast %21 : vector<1x1x64xf32> to vector<1x64xf32>
    %23 = vector.broadcast %22 : vector<1x64xf32> to vector<8x64xf32>
    %24 = arith.addf %20, %23 : vector<8x64xf32>
    %25 = arith.negf %8 : vector<8x64xf32>
    %26 = math.exp %25 : vector<8x64xf32>
    %cst_19 = arith.constant 1.000000e+00 : f32
    %27 = vector.broadcast %cst_19 : f32 to vector<8x64xf32>
    %28 = arith.addf %27, %26 : vector<8x64xf32>
    %29 = arith.divf %27, %28 : vector<8x64xf32>
    %30 = math.tanh %16 : vector<8x64xf32>
    %31 = arith.mulf %29, %30 : vector<8x64xf32>
    %32 = arith.negf %24 : vector<8x64xf32>
    %33 = math.exp %32 : vector<8x64xf32>
    %cst_20 = arith.constant 1.000000e+00 : f32
    %34 = vector.broadcast %cst_20 : f32 to vector<8x64xf32>
    %35 = arith.addf %34, %33 : vector<8x64xf32>
    %36 = arith.divf %34, %35 : vector<8x64xf32>
    %37 = math.tanh %31 : vector<8x64xf32>
    %38 = arith.mulf %36, %37 : vector<8x64xf32>
    %c0_21 = arith.constant 0 : index
    %c0_22 = arith.constant 0 : index
    %c0_23 = arith.constant 0 : index
    %39 = vector.load %arg3[%c0_21, %c0_22, %c0_23] : memref<3x64x64xbf16, #tpu.memory_space<vmem>>, vector<1x64x64xbf16>
    %40 = vector.shape_cast %39 : vector<1x64x64xbf16> to vector<64x64xbf16>
    %41 = arith.truncf %38 : vector<8x64xf32> to vector<8x64xbf16>
    %cst_24 = arith.constant dense<0.000000e+00> : vector<8x64xf32>
    %42 = tpu.matmul %41, %40, %cst_24 {dimension_numbers = #tpu.dot_dimension_numbers<[1], [0], [0], [1], [0, 0, 1, 1], [], []>} : vector<8x64xbf16>, vector<64x64xbf16>, vector<8x64xf32> -> vector<8x64xf32>
    %c0_25 = arith.constant 0 : index
    %c0_26 = arith.constant 0 : index
    %c0_27 = arith.constant 0 : index
    %43 = vector.load %arg4[%c0_25, %c0_26, %c0_27] : memref<3x1x64xf32, #tpu.memory_space<vmem>>, vector<1x1x64xf32>
    %44 = vector.shape_cast %43 : vector<1x1x64xf32> to vector<1x64xf32>
    %45 = vector.broadcast %44 : vector<1x64xf32> to vector<8x64xf32>
    %46 = arith.addf %42, %45 : vector<8x64xf32>
    %c1_28 = arith.constant 1 : index
    %c0_29 = arith.constant 0 : index
    %c0_30 = arith.constant 0 : index
    %47 = vector.load %arg3[%c1_28, %c0_29, %c0_30] : memref<3x64x64xbf16, #tpu.memory_space<vmem>>, vector<1x64x64xbf16>
    %48 = vector.shape_cast %47 : vector<1x64x64xbf16> to vector<64x64xbf16>
    %49 = arith.truncf %38 : vector<8x64xf32> to vector<8x64xbf16>
    %cst_31 = arith.constant dense<0.000000e+00> : vector<8x64xf32>
    %50 = tpu.matmul %49, %48, %cst_31 {dimension_numbers = #tpu.dot_dimension_numbers<[1], [0], [0], [1], [0, 0, 1, 1], [], []>} : vector<8x64xbf16>, vector<64x64xbf16>, vector<8x64xf32> -> vector<8x64xf32>
    %c1_32 = arith.constant 1 : index
    %c0_33 = arith.constant 0 : index
    %c0_34 = arith.constant 0 : index
    %51 = vector.load %arg4[%c1_32, %c0_33, %c0_34] : memref<3x1x64xf32, #tpu.memory_space<vmem>>, vector<1x1x64xf32>
    %52 = vector.shape_cast %51 : vector<1x1x64xf32> to vector<1x64xf32>
    %53 = vector.broadcast %52 : vector<1x64xf32> to vector<8x64xf32>
    %54 = arith.addf %50, %53 : vector<8x64xf32>
    %c2_35 = arith.constant 2 : index
    %c0_36 = arith.constant 0 : index
    %c0_37 = arith.constant 0 : index
    %55 = vector.load %arg3[%c2_35, %c0_36, %c0_37] : memref<3x64x64xbf16, #tpu.memory_space<vmem>>, vector<1x64x64xbf16>
    %56 = vector.shape_cast %55 : vector<1x64x64xbf16> to vector<64x64xbf16>
    %57 = arith.truncf %38 : vector<8x64xf32> to vector<8x64xbf16>
    %cst_38 = arith.constant dense<0.000000e+00> : vector<8x64xf32>
    %58 = tpu.matmul %57, %56, %cst_38 {dimension_numbers = #tpu.dot_dimension_numbers<[1], [0], [0], [1], [0, 0, 1, 1], [], []>} : vector<8x64xbf16>, vector<64x64xbf16>, vector<8x64xf32> -> vector<8x64xf32>
    %c2_39 = arith.constant 2 : index
    %c0_40 = arith.constant 0 : index
    %c0_41 = arith.constant 0 : index
    %59 = vector.load %arg4[%c2_39, %c0_40, %c0_41] : memref<3x1x64xf32, #tpu.memory_space<vmem>>, vector<1x1x64xf32>
    %60 = vector.shape_cast %59 : vector<1x1x64xf32> to vector<1x64xf32>
    %61 = vector.broadcast %60 : vector<1x64xf32> to vector<8x64xf32>
    %62 = arith.addf %58, %61 : vector<8x64xf32>
    %63 = arith.negf %46 : vector<8x64xf32>
    %64 = math.exp %63 : vector<8x64xf32>
    %cst_42 = arith.constant 1.000000e+00 : f32
    %65 = vector.broadcast %cst_42 : f32 to vector<8x64xf32>
    %66 = arith.addf %65, %64 : vector<8x64xf32>
    %67 = arith.divf %65, %66 : vector<8x64xf32>
    %68 = math.tanh %54 : vector<8x64xf32>
    %69 = arith.mulf %67, %68 : vector<8x64xf32>
    %70 = arith.negf %62 : vector<8x64xf32>
    %71 = math.exp %70 : vector<8x64xf32>
    %cst_43 = arith.constant 1.000000e+00 : f32
    %72 = vector.broadcast %cst_43 : f32 to vector<8x64xf32>
    %73 = arith.addf %72, %71 : vector<8x64xf32>
    %74 = arith.divf %72, %73 : vector<8x64xf32>
    %75 = math.tanh %69 : vector<8x64xf32>
    %76 = arith.mulf %74, %75 : vector<8x64xf32>
    %c0_44 = arith.constant 0 : index
    %c0_45 = arith.constant 0 : index
    %c0_46 = arith.constant 0 : index
    %77 = vector.load %arg5[%c0_44, %c0_45, %c0_46] : memref<3x64x64xbf16, #tpu.memory_space<vmem>>, vector<1x64x64xbf16>
    %78 = vector.shape_cast %77 : vector<1x64x64xbf16> to vector<64x64xbf16>
    %79 = arith.truncf %76 : vector<8x64xf32> to vector<8x64xbf16>
    %cst_47 = arith.constant dense<0.000000e+00> : vector<8x64xf32>
    %80 = tpu.matmul %79, %78, %cst_47 {dimension_numbers = #tpu.dot_dimension_numbers<[1], [0], [0], [1], [0, 0, 1, 1], [], []>} : vector<8x64xbf16>, vector<64x64xbf16>, vector<8x64xf32> -> vector<8x64xf32>
    %c0_48 = arith.constant 0 : index
    %c0_49 = arith.constant 0 : index
    %c0_50 = arith.constant 0 : index
    %81 = vector.load %arg6[%c0_48, %c0_49, %c0_50] : memref<3x1x64xf32, #tpu.memory_space<vmem>>, vector<1x1x64xf32>
    %82 = vector.shape_cast %81 : vector<1x1x64xf32> to vector<1x64xf32>
    %83 = vector.broadcast %82 : vector<1x64xf32> to vector<8x64xf32>
    %84 = arith.addf %80, %83 : vector<8x64xf32>
    %c1_51 = arith.constant 1 : index
    %c0_52 = arith.constant 0 : index
    %c0_53 = arith.constant 0 : index
    %85 = vector.load %arg5[%c1_51, %c0_52, %c0_53] : memref<3x64x64xbf16, #tpu.memory_space<vmem>>, vector<1x64x64xbf16>
    %86 = vector.shape_cast %85 : vector<1x64x64xbf16> to vector<64x64xbf16>
    %87 = arith.truncf %76 : vector<8x64xf32> to vector<8x64xbf16>
    %cst_54 = arith.constant dense<0.000000e+00> : vector<8x64xf32>
    %88 = tpu.matmul %87, %86, %cst_54 {dimension_numbers = #tpu.dot_dimension_numbers<[1], [0], [0], [1], [0, 0, 1, 1], [], []>} : vector<8x64xbf16>, vector<64x64xbf16>, vector<8x64xf32> -> vector<8x64xf32>
    %c1_55 = arith.constant 1 : index
    %c0_56 = arith.constant 0 : index
    %c0_57 = arith.constant 0 : index
    %89 = vector.load %arg6[%c1_55, %c0_56, %c0_57] : memref<3x1x64xf32, #tpu.memory_space<vmem>>, vector<1x1x64xf32>
    %90 = vector.shape_cast %89 : vector<1x1x64xf32> to vector<1x64xf32>
    %91 = vector.broadcast %90 : vector<1x64xf32> to vector<8x64xf32>
    %92 = arith.addf %88, %91 : vector<8x64xf32>
    %c2_58 = arith.constant 2 : index
    %c0_59 = arith.constant 0 : index
    %c0_60 = arith.constant 0 : index
    %93 = vector.load %arg5[%c2_58, %c0_59, %c0_60] : memref<3x64x64xbf16, #tpu.memory_space<vmem>>, vector<1x64x64xbf16>
    %94 = vector.shape_cast %93 : vector<1x64x64xbf16> to vector<64x64xbf16>
    %95 = arith.truncf %76 : vector<8x64xf32> to vector<8x64xbf16>
    %cst_61 = arith.constant dense<0.000000e+00> : vector<8x64xf32>
    %96 = tpu.matmul %95, %94, %cst_61 {dimension_numbers = #tpu.dot_dimension_numbers<[1], [0], [0], [1], [0, 0, 1, 1], [], []>} : vector<8x64xbf16>, vector<64x64xbf16>, vector<8x64xf32> -> vector<8x64xf32>
    %c2_62 = arith.constant 2 : index
    %c0_63 = arith.constant 0 : index
    %c0_64 = arith.constant 0 : index
    %97 = vector.load %arg6[%c2_62, %c0_63, %c0_64] : memref<3x1x64xf32, #tpu.memory_space<vmem>>, vector<1x1x64xf32>
    %98 = vector.shape_cast %97 : vector<1x1x64xf32> to vector<1x64xf32>
    %99 = vector.broadcast %98 : vector<1x64xf32> to vector<8x64xf32>
    %100 = arith.addf %96, %99 : vector<8x64xf32>
    %101 = arith.negf %84 : vector<8x64xf32>
    %102 = math.exp %101 : vector<8x64xf32>
    %cst_65 = arith.constant 1.000000e+00 : f32
    %103 = vector.broadcast %cst_65 : f32 to vector<8x64xf32>
    %104 = arith.addf %103, %102 : vector<8x64xf32>
    %105 = arith.divf %103, %104 : vector<8x64xf32>
    %106 = math.tanh %92 : vector<8x64xf32>
    %107 = arith.mulf %105, %106 : vector<8x64xf32>
    %108 = arith.negf %100 : vector<8x64xf32>
    %109 = math.exp %108 : vector<8x64xf32>
    %cst_66 = arith.constant 1.000000e+00 : f32
    %110 = vector.broadcast %cst_66 : f32 to vector<8x64xf32>
    %111 = arith.addf %110, %109 : vector<8x64xf32>
    %112 = arith.divf %110, %111 : vector<8x64xf32>
    %113 = math.tanh %107 : vector<8x64xf32>
    %114 = arith.mulf %112, %113 : vector<8x64xf32>
    %c0_67 = arith.constant 0 : index
    %c0_68 = arith.constant 0 : index
    %115 = vector.load %arg7[%c0_67, %c0_68] : memref<64x64xbf16, #tpu.memory_space<vmem>>, vector<64x64xbf16>
    %116 = arith.truncf %114 : vector<8x64xf32> to vector<8x64xbf16>
    %cst_69 = arith.constant dense<0.000000e+00> : vector<8x64xf32>
    %117 = tpu.matmul %116, %115, %cst_69 {dimension_numbers = #tpu.dot_dimension_numbers<[1], [0], [0], [1], [0, 0, 1, 1], [], []>} : vector<8x64xbf16>, vector<64x64xbf16>, vector<8x64xf32> -> vector<8x64xf32>
    %c0_70 = arith.constant 0 : index
    %c0_71 = arith.constant 0 : index
    %118 = vector.load %arg8[%c0_70, %c0_71] : memref<1x64xf32, #tpu.memory_space<vmem>>, vector<1x64xf32>
    %119 = vector.broadcast %118 : vector<1x64xf32> to vector<8x64xf32>
    %120 = arith.addf %117, %119 : vector<8x64xf32>
    %cst_72 = arith.constant 0.000000e+00 : f32
    %121 = vector.broadcast %cst_72 : f32 to vector<8x64xf32>
    %122 = arith.cmpf ogt, %120, %121 : vector<8x64xf32>
    %cst_73 = arith.constant 0.00999999977 : f32
    %123 = vector.broadcast %cst_73 : f32 to vector<8x64xf32>
    %124 = arith.mulf %123, %120 : vector<8x64xf32>
    %125 = arith.select %122, %120, %124 : vector<8x64xi1>, vector<8x64xf32>
    %c0_74 = arith.constant 0 : index
    %c0_75 = arith.constant 0 : index
    %126 = vector.load %arg9[%c0_74, %c0_75] : memref<64x64xbf16, #tpu.memory_space<vmem>>, vector<64x64xbf16>
    %127 = arith.truncf %125 : vector<8x64xf32> to vector<8x64xbf16>
    %cst_76 = arith.constant dense<0.000000e+00> : vector<8x64xf32>
    %128 = tpu.matmul %127, %126, %cst_76 {dimension_numbers = #tpu.dot_dimension_numbers<[1], [0], [0], [1], [0, 0, 1, 1], [], []>} : vector<8x64xbf16>, vector<64x64xbf16>, vector<8x64xf32> -> vector<8x64xf32>
    %c0_77 = arith.constant 0 : index
    %c0_78 = arith.constant 0 : index
    %129 = vector.load %arg10[%c0_77, %c0_78] : memref<1x64xf32, #tpu.memory_space<vmem>>, vector<1x64xf32>
    %130 = vector.broadcast %129 : vector<1x64xf32> to vector<8x64xf32>
    %131 = arith.addf %128, %130 : vector<8x64xf32>
    %cst_79 = arith.constant 0.000000e+00 : f32
    %132 = vector.broadcast %cst_79 : f32 to vector<8x64xf32>
    %133 = arith.cmpf ogt, %131, %132 : vector<8x64xf32>
    %cst_80 = arith.constant 0.00999999977 : f32
    %134 = vector.broadcast %cst_80 : f32 to vector<8x64xf32>
    %135 = arith.mulf %134, %131 : vector<8x64xf32>
    %136 = arith.select %133, %131, %135 : vector<8x64xi1>, vector<8x64xf32>
    %c0_81 = arith.constant 0 : index
    %c0_82 = arith.constant 0 : index
    %137 = vector.load %arg11[%c0_81, %c0_82] : memref<64x64xbf16, #tpu.memory_space<vmem>>, vector<64x64xbf16>
    %138 = arith.truncf %136 : vector<8x64xf32> to vector<8x64xbf16>
    %cst_83 = arith.constant dense<0.000000e+00> : vector<8x64xf32>
    %139 = tpu.matmul %138, %137, %cst_83 {dimension_numbers = #tpu.dot_dimension_numbers<[1], [0], [0], [1], [0, 0, 1, 1], [], []>} : vector<8x64xbf16>, vector<64x64xbf16>, vector<8x64xf32> -> vector<8x64xf32>
    %c0_84 = arith.constant 0 : index
    %c0_85 = arith.constant 0 : index
    %140 = vector.load %arg12[%c0_84, %c0_85] : memref<1x64xf32, #tpu.memory_space<vmem>>, vector<1x64xf32>
    %141 = vector.broadcast %140 : vector<1x64xf32> to vector<8x64xf32>
    %142 = arith.addf %139, %141 : vector<8x64xf32>
    %cst_86 = arith.constant 0.000000e+00 : f32
    %143 = vector.broadcast %cst_86 : f32 to vector<8x64xf32>
    %144 = arith.maximumf %142, %143 : vector<8x64xf32>
    %c0_87 = arith.constant 0 : index
    %c0_88 = arith.constant 0 : index
    %145 = vector.load %arg13[%c0_87, %c0_88] : memref<64x64xbf16, #tpu.memory_space<vmem>>, vector<64x64xbf16>
    %146 = arith.truncf %144 : vector<8x64xf32> to vector<8x64xbf16>
    %cst_89 = arith.constant dense<0.000000e+00> : vector<8x64xf32>
    %147 = tpu.matmul %146, %145, %cst_89 {dimension_numbers = #tpu.dot_dimension_numbers<[1], [0], [0], [1], [0, 0, 1, 1], [], []>} : vector<8x64xbf16>, vector<64x64xbf16>, vector<8x64xf32> -> vector<8x64xf32>
    %c0_90 = arith.constant 0 : index
    %c0_91 = arith.constant 0 : index
    %148 = vector.load %arg14[%c0_90, %c0_91] : memref<1x64xf32, #tpu.memory_space<vmem>>, vector<1x64xf32>
    %149 = vector.broadcast %148 : vector<1x64xf32> to vector<8x64xf32>
    %150 = arith.addf %147, %149 : vector<8x64xf32>
    %cst_92 = arith.constant 0.000000e+00 : f32
    %151 = vector.broadcast %cst_92 : f32 to vector<8x64xf32>
    %152 = arith.maximumf %150, %151 : vector<8x64xf32>
    %c0_93 = arith.constant 0 : index
    %c0_94 = arith.constant 0 : index
    %153 = vector.load %arg15[%c0_93, %c0_94] : memref<64x128xbf16, #tpu.memory_space<vmem>>, vector<64x128xbf16>
    %154 = arith.truncf %152 : vector<8x64xf32> to vector<8x64xbf16>
    %cst_95 = arith.constant dense<0.000000e+00> : vector<8x128xf32>
    %155 = tpu.matmul %154, %153, %cst_95 {dimension_numbers = #tpu.dot_dimension_numbers<[1], [0], [0], [1], [0, 0, 1, 1], [], []>} : vector<8x64xbf16>, vector<64x128xbf16>, vector<8x128xf32> -> vector<8x128xf32>
    %c0_96 = arith.constant 0 : index
    %c0_97 = arith.constant 0 : index
    %156 = vector.load %arg16[%c0_96, %c0_97] : memref<1x128xf32, #tpu.memory_space<vmem>>, vector<1x128xf32>
    %157 = vector.broadcast %156 : vector<1x128xf32> to vector<8x128xf32>
    %158 = arith.addf %155, %157 : vector<8x128xf32>
    %c0_98 = arith.constant 0 : index
    %c0_99 = arith.constant 0 : index
    %159 = vector.load %arg17[%c0_98, %c0_99] : memref<8x128xf32, #tpu.memory_space<vmem>>, vector<8x128xf32>
    tpu.vector_store %arg17[%c0_98, %c0_99], %158 {strides = array<i32>} : memref<8x128xf32, #tpu.memory_space<vmem>>, vector<8x128xf32>,
    return
  }
}

</mosaic_0001>

<llo_original>
// kernel: tpu_custom_call.1
$region0: #{tpu_custom_call.1}
  #allocation0 [shape = 'u32[]', space=smem, size = 0x4, offset = 0x4, fixed_abs, tag = 'smem constant byte address 0x4 - core index']
  #allocation1 [shape = 'u32[72,128]{1,0:T(1,128)}', space=vmem, size = 0x9000, scoped, tag = 'internal scratch']
  %s0 = inlined_call_operand.vmem [shape: f32[8,429], index: 0, kind: input, shape index: {}]
  %s1 = inlined_call_operand.vmem [shape: bf16[3,429,64], index: 1, kind: input, shape index: {}]
  %s2 = inlined_call_operand.vmem [shape: f32[3,1,64], index: 2, kind: input, shape index: {}]
  %s3 = inlined_call_operand.vmem [shape: bf16[3,64,64], index: 3, kind: input, shape index: {}]
  %s4 = inlined_call_operand.vmem [shape: f32[3,1,64], index: 4, kind: input, shape index: {}]
  %s5 = inlined_call_operand.vmem [shape: bf16[3,64,64], index: 5, kind: input, shape index: {}]
  %s6 = inlined_call_operand.vmem [shape: f32[3,1,64], index: 6, kind: input, shape index: {}]
  %s7 = inlined_call_operand.vmem [shape: bf16[64,64], index: 7, kind: input, shape index: {}]
  %s8 = inlined_call_operand.vmem [shape: f32[1,64], index: 8, kind: input, shape index: {}]
  %s9 = inlined_call_operand.vmem [shape: bf16[64,64], index: 9, kind: input, shape index: {}]
  %s10 = inlined_call_operand.vmem [shape: f32[1,64], index: 10, kind: input, shape index: {}]
  %s11 = inlined_call_operand.vmem [shape: bf16[64,64], index: 11, kind: input, shape index: {}]
  %s12 = inlined_call_operand.vmem [shape: f32[1,64], index: 12, kind: input, shape index: {}]
  %s13 = inlined_call_operand.vmem [shape: bf16[64,64], index: 13, kind: input, shape index: {}]
  %s14 = inlined_call_operand.vmem [shape: f32[1,64], index: 14, kind: input, shape index: {}]
  %s15 = inlined_call_operand.vmem [shape: bf16[64,128], index: 15, kind: input, shape index: {}]
  %s16 = inlined_call_operand.vmem [shape: f32[1,128], index: 16, kind: input, shape index: {}]
  %s17 = inlined_call_operand.hbm [shape: f32[8,128], index: 17, kind: output, shape index: {}]
  %s18 = sld [smem:[#allocation0]]
  $region78: #{tpu_custom_call.1} parent=0
    _
  %s20 = ssub.s32 1, %s18
  %s21 = scalar_select 0, %s20, %s18
  $region1: #{tpu_custom_call.1} parent=0
    #allocation2 [shape = 'u8[4096]{0}', space=vmem, size = 0x1000, scoped, tag = 'output window, operand 0, single buffered']
    #allocation3 [shape = 's32[1]{0}', space=sflag, size = 0x4, scoped, tag = 'scoped memory for tpu_custom_call.1']
    %22 = vsyncpa [#allocation3], 0
    // Predicated region
    $region2: #{tpu_custom_call.1} parent=1 // pred_check
      _
    $region3: #{tpu_custom_call.1} parent=1 // pred_check_branch
      %24 = sbr.rel (0) target = $region5
    $region4: #{tpu_custom_call.1} parent=1 // pred_region
      _
    $region5: #{tpu_custom_call.1} parent=1 // pred_fallthru
      _
    // Predicated region
    $region6: #{tpu_custom_call.1} parent=1 // pred_check
      _
    $region7: #{tpu_custom_call.1} parent=1 // pred_check_branch
      %26 = sbr.rel (0) target = $region9
    $region8: #{tpu_custom_call.1} parent=1 // pred_region
      _
    $region9: #{tpu_custom_call.1} parent=1 // pred_fallthru
      _
    // Predicated region
    $region10: #{tpu_custom_call.1} parent=1 // pred_check
      _
    $region11: #{tpu_custom_call.1} parent=1 // pred_check_branch
      %28 = sbr.rel (0) target = $region13
    $region12: #{tpu_custom_call.1} parent=1 // pred_region
      _
    $region13: #{tpu_custom_call.1} parent=1 // pred_fallthru
      _
    // Predicated region
    $region14: #{tpu_custom_call.1} parent=1 // pred_check
      _
    $region15: #{tpu_custom_call.1} parent=1 // pred_check_branch
      %30 = sbr.rel (0) target = $region17
    $region16: #{tpu_custom_call.1} parent=1 // pred_region
      _
    $region17: #{tpu_custom_call.1} parent=1 // pred_fallthru
      _
    // Predicated region
    $region18: #{tpu_custom_call.1} parent=1 // pred_check
      _
    $region19: #{tpu_custom_call.1} parent=1 // pred_check_branch
      %32 = sbr.rel (0) target = $region21
    $region20: #{tpu_custom_call.1} parent=1 // pred_region
      _
    $region21: #{tpu_custom_call.1} parent=1 // pred_fallthru
      _
    // Predicated region
    $region22: #{tpu_custom_call.1} parent=1 // pred_check
      _
    $region23: #{tpu_custom_call.1} parent=1 // pred_check_branch
      %34 = sbr.rel (0) target = $region25
    $region24: #{tpu_custom_call.1} parent=1 // pred_region
      _
    $region25: #{tpu_custom_call.1} parent=1 // pred_fallthru
      _
    // Predicated region
    $region26: #{tpu_custom_call.1} parent=1 // pred_check
      _
    $region27: #{tpu_custom_call.1} parent=1 // pred_check_branch
      %36 = sbr.rel (0) target = $region29
    $region28: #{tpu_custom_call.1} parent=1 // pred_region
      _
    $region29: #{tpu_custom_call.1} parent=1 // pred_fallthru
      _
    // Predicated region
    $region30: #{tpu_custom_call.1} parent=1 // pred_check
      _
    $region31: #{tpu_custom_call.1} parent=1 // pred_check_branch
      %38 = sbr.rel (0) target = $region33
    $region32: #{tpu_custom_call.1} parent=1 // pred_region
      _
    $region33: #{tpu_custom_call.1} parent=1 // pred_fallthru
      _
    // Predicated region
    $region34: #{tpu_custom_call.1} parent=1 // pred_check
      _
    $region35: #{tpu_custom_call.1} parent=1 // pred_check_branch
      %40 = sbr.rel (0) target = $region37
    $region36: #{tpu_custom_call.1} parent=1 // pred_region
      _
    $region37: #{tpu_custom_call.1} parent=1 // pred_fallthru
      _
    // Predicated region
    $region38: #{tpu_custom_call.1} parent=1 // pred_check
      _
    $region39: #{tpu_custom_call.1} parent=1 // pred_check_branch
      %42 = sbr.rel (0) target = $region41
    $region40: #{tpu_custom_call.1} parent=1 // pred_region
      _
    $region41: #{tpu_custom_call.1} parent=1 // pred_fallthru
      _
    // Predicated region
    $region42: #{tpu_custom_call.1} parent=1 // pred_check
      _
    $region43: #{tpu_custom_call.1} parent=1 // pred_check_branch
      %44 = sbr.rel (0) target = $region45
    $region44: #{tpu_custom_call.1} parent=1 // pred_region
      _
    $region45: #{tpu_custom_call.1} parent=1 // pred_fallthru
      _
    // Predicated region
    $region46: #{tpu_custom_call.1} parent=1 // pred_check
      _
    $region47: #{tpu_custom_call.1} parent=1 // pred_check_branch
      %46 = sbr.rel (0) target = $region49
    $region48: #{tpu_custom_call.1} parent=1 // pred_region
      _
    $region49: #{tpu_custom_call.1} parent=1 // pred_fallthru
      _
    // Predicated region
    $region50: #{tpu_custom_call.1} parent=1 // pred_check
      _
    $region51: #{tpu_custom_call.1} parent=1 // pred_check_branch
      %48 = sbr.rel (0) target = $region53
    $region52: #{tpu_custom_call.1} parent=1 // pred_region
      _
    $region53: #{tpu_custom_call.1} parent=1 // pred_fallthru
      _
    // Predicated region
    $region54: #{tpu_custom_call.1} parent=1 // pred_check
      _
    $region55: #{tpu_custom_call.1} parent=1 // pred_check_branch
      %50 = sbr.rel (0) target = $region57
    $region56: #{tpu_custom_call.1} parent=1 // pred_region
      _
    $region57: #{tpu_custom_call.1} parent=1 // pred_fallthru
      _
    // Predicated region
    $region58: #{tpu_custom_call.1} parent=1 // pred_check
      _
    $region59: #{tpu_custom_call.1} parent=1 // pred_check_branch
      %52 = sbr.rel (0) target = $region61
    $region60: #{tpu_custom_call.1} parent=1 // pred_region
      _
    $region61: #{tpu_custom_call.1} parent=1 // pred_fallthru
      _
    // Predicated region
    $region62: #{tpu_custom_call.1} parent=1 // pred_check
      _
    $region63: #{tpu_custom_call.1} parent=1 // pred_check_branch
      %54 = sbr.rel (0) target = $region65
    $region64: #{tpu_custom_call.1} parent=1 // pred_region
      _
    $region65: #{tpu_custom_call.1} parent=1 // pred_fallthru
      _
    // Predicated region
    $region66: #{tpu_custom_call.1} parent=1 // pred_check
      _
    $region67: #{tpu_custom_call.1} parent=1 // pred_check_branch
      %56 = sbr.rel (0) target = $region69
    $region68: #{tpu_custom_call.1} parent=1 // pred_region
      _
    $region69: #{tpu_custom_call.1} parent=1 // pred_fallthru
      _
    %v58 = vld [vmem:[%s0] sm:$0xff]
    %v59 = vld [vmem:[%s0 + $0x8] sm:$0xff]
    %v60 = vld [vmem:[%s0 + $0x10] sm:$0xff]
    %v61 = vld [vmem:[%s0 + $0x18] sm:$0xff]
    %v62 = vld [vmem:[%s1] sm:$0xf]
    %v63 = vld [vmem:[%s1 + $0x4] sm:$0xf]
    %v64 = vld [vmem:[%s1 + $0x8] sm:$0xf]
    %v65 = vld [vmem:[%s1 + $0xc] sm:$0xf]
    %v66 = vld [vmem:[%s1 + $0x10] sm:$0xf]
    %v67 = vld [vmem:[%s1 + $0x14] sm:$0xf]
    %v68 = vld [vmem:[%s1 + $0x18] sm:$0xf]
    %v69 = vld [vmem:[%s1 + $0x1c] sm:$0xf]
    %v70 = vld [vmem:[%s1 + $0x20] sm:$0xf]
    %v71 = vld [vmem:[%s1 + $0x24] sm:$0xf]
    %v72 = vld [vmem:[%s1 + $0x28] sm:$0xf]
    %v73 = vld [vmem:[%s1 + $0x2c] sm:$0xf]
    %v74 = vld [vmem:[%s1 + $0x30] sm:$0xf]
    %v75 = vld [vmem:[%s1 + $0x34] sm:$0xf]
    %v76 = vld [vmem:[%s1 + $0x38] sm:$0xf]
    %v77 = vld [vmem:[%s1 + $0x3c] sm:$0xf]
    %v78 = vld [vmem:[%s1 + $0x40] sm:$0xf]
    %v79 = vld [vmem:[%s1 + $0x44] sm:$0xf]
    %v80 = vld [vmem:[%s1 + $0x48] sm:$0xf]
    %v81 = vld [vmem:[%s1 + $0x4c] sm:$0xf]
    %v82 = vld [vmem:[%s1 + $0x50] sm:$0xf]
    %v83 = vld [vmem:[%s1 + $0x54] sm:$0xf]
    %v84 = vld [vmem:[%s1 + $0x58] sm:$0xf]
    %v85 = vld [vmem:[%s1 + $0x5c] sm:$0xf]
    %v86 = vld [vmem:[%s1 + $0x60] sm:$0xf]
    %v87 = vld [vmem:[%s1 + $0x64] sm:$0xf]
    %v88 = vld [vmem:[%s1 + $0x68] sm:$0xf]
    %v89 = vld [vmem:[%s1 + $0x6c] sm:$0xf]
    %v90 = vld [vmem:[%s1 + $0x70] sm:$0xf]
    %v91 = vld [vmem:[%s1 + $0x74] sm:$0xf]
    %v92 = vld [vmem:[%s1 + $0x78] sm:$0xf]
    %v93 = vld [vmem:[%s1 + $0x7c] sm:$0xf]
    %v94 = vld [vmem:[%s1 + $0x80] sm:$0xf]
    %v95 = vld [vmem:[%s1 + $0x84] sm:$0xf]
    %v96 = vld [vmem:[%s1 + $0x88] sm:$0xf]
    %v97 = vld [vmem:[%s1 + $0x8c] sm:$0xf]
    %v98 = vld [vmem:[%s1 + $0x90] sm:$0xf]
    %v99 = vld [vmem:[%s1 + $0x94] sm:$0xf]
    %v100 = vld [vmem:[%s1 + $0x98] sm:$0xf]
    %v101 = vld [vmem:[%s1 + $0x9c] sm:$0xf]
    %v102 = vld [vmem:[%s1 + $0xa0] sm:$0xf]
    %v103 = vld [vmem:[%s1 + $0xa4] sm:$0xf]
    %v104 = vld [vmem:[%s1 + $0xa8] sm:$0xf]
    %v105 = vld [vmem:[%s1 + $0xac] sm:$0xf]
    %v106 = vld [vmem:[%s1 + $0xb0] sm:$0xf]
    %v107 = vld [vmem:[%s1 + $0xb4] sm:$0xf]
    %v108 = vld [vmem:[%s1 + $0xb8] sm:$0xf]
    %v109 = vld [vmem:[%s1 + $0xbc] sm:$0xf]
    %v110 = vld [vmem:[%s1 + $0xc0] sm:$0xf]
    %v111 = vld [vmem:[%s1 + $0xc4] sm:$0xf]
    %v112 = vld [vmem:[%s1 + $0xc8] sm:$0xf]
    %v113 = vld [vmem:[%s1 + $0xcc] sm:$0xf]
    %v114 = vld [vmem:[%s1 + $0xd0] sm:$0xf]
    %v115 = vld [vmem:[%s1 + $0xd4] sm:$0x7]
    %v116 = vpack.c.bf16 %v58, %v58
    %v117 = vpack.c.bf16 %v59, %v59
    %v118 = vpack.c.bf16 %v60, %v60
    %v119 = vpack.c.bf16 %v61, %v61
    %v120 = vld [vmem:[%s2] sm:$0x1]
    %v122 = vperm.slane %v120, 0
    %v178 = vunpack.c.l.b16 %v62
    %v179 = vunpack.c.l.b16 %v63
    %v180 = vunpack.c.l.b16 %v64
    %v181 = vunpack.c.l.b16 %v65
    %v182 = vunpack.c.l.b16 %v66
    %v183 = vunpack.c.l.b16 %v67
    %v184 = vunpack.c.l.b16 %v68
    %v185 = vunpack.c.l.b16 %v69
    %v186 = vunpack.c.l.b16 %v70
    %v187 = vunpack.c.l.b16 %v71
    %v188 = vunpack.c.l.b16 %v72
    %v189 = vunpack.c.l.b16 %v73
    %v190 = vunpack.c.l.b16 %v74
    %v191 = vunpack.c.l.b16 %v75
    %v192 = vunpack.c.l.b16 %v76
    %v193 = vunpack.c.l.b16 %v77
    %v194 = vunpack.c.l.b16 %v78
    %v195 = vunpack.c.l.b16 %v79
    %v196 = vunpack.c.l.b16 %v80
    %v197 = vunpack.c.l.b16 %v81
    %v198 = vunpack.c.l.b16 %v82
    %v199 = vunpack.c.l.b16 %v83
    %v200 = vunpack.c.l.b16 %v84
    %v201 = vunpack.c.l.b16 %v85
    %v202 = vunpack.c.l.b16 %v86
    %v203 = vunpack.c.l.b16 %v87
    %v204 = vunpack.c.l.b16 %v88
    %v205 = vunpack.c.l.b16 %v89
    %v206 = vunpack.c.l.b16 %v90
    %v207 = vunpack.c.l.b16 %v91
    %v208 = vunpack.c.l.b16 %v92
    %v209 = vunpack.c.l.b16 %v93
    %v210 = vunpack.c.l.b16 %v94
    %v211 = vunpack.c.l.b16 %v95
    %v212 = vunpack.c.l.b16 %v96
    %v213 = vunpack.c.l.b16 %v97
    %v214 = vunpack.c.l.b16 %v98
    %v215 = vunpack.c.l.b16 %v99
    %v216 = vunpack.c.l.b16 %v100
    %v217 = vunpack.c.l.b16 %v101
    %v218 = vunpack.c.l.b16 %v102
    %v219 = vunpack.c.l.b16 %v103
    %v220 = vunpack.c.l.b16 %v104
    %v221 = vunpack.c.l.b16 %v105
    %v222 = vunpack.c.l.b16 %v106
    %v223 = vunpack.c.l.b16 %v107
    %v224 = vunpack.c.l.b16 %v108
    %v225 = vunpack.c.l.b16 %v109
    %v226 = vunpack.c.l.b16 %v110
    %v227 = vunpack.c.l.b16 %v111
    %v228 = vunpack.c.l.b16 %v112
    %v229 = vunpack.c.l.b16 %v113
    %v230 = vunpack.c.l.b16 %v114
    %v231 = vunpack.c.l.b16 %v115
    %v232 = vpack.c.b16 %v179, %v178
    %v233 = vpack.c.b16 %v181, %v180
    %v234 = vpack.c.b16 %v183, %v182
    %v235 = vpack.c.b16 %v185, %v184
    %v236 = vpack.c.b16 %v187, %v186
    %v237 = vpack.c.b16 %v189, %v188
    %v238 = vpack.c.b16 %v191, %v190
    %v239 = vpack.c.b16 %v193, %v192
    %v240 = vpack.c.b16 %v195, %v194
    %v241 = vpack.c.b16 %v197, %v196
    %v242 = vpack.c.b16 %v199, %v198
    %v243 = vpack.c.b16 %v201, %v200
    %v244 = vpack.c.b16 %v203, %v202
    %v245 = vpack.c.b16 %v205, %v204
    %v246 = vpack.c.b16 %v207, %v206
    %v247 = vpack.c.b16 %v209, %v208
    %v248 = vpack.c.b16 %v211, %v210
    %v249 = vpack.c.b16 %v213, %v212
    %v250 = vpack.c.b16 %v215, %v214
    %v251 = vpack.c.b16 %v217, %v216
    %v252 = vpack.c.b16 %v219, %v218
    %v253 = vpack.c.b16 %v221, %v220
    %v254 = vpack.c.b16 %v223, %v222
    %v255 = vpack.c.b16 %v225, %v224
    %v256 = vpack.c.b16 %v227, %v226
    %v257 = vpack.c.b16 %v229, %v228
    %v258 = vpack.c.b16 %v231, %v230
    %vm285 = vcmask 367616
    %v287 = vsel %vm285, %v119, 0
    %vm289 = vcmask 1045504
    %vm290 = vcmask 1046528
    %v291 = vsel %vm289, 4294967295, 65535
    %v292 = vsel %vm290, %v291, 0
    %v294 = vand.u32 %v258, %v292
    %296 = vmatpush.bf16.msra.mxu0 %v239
    %297 = vmatpush.bf16.msra.mxu0 %v238
    %298 = vmatpush.bf16.msra.mxu0 %v237
    %299 = vmatpush.bf16.msra.mxu0 %v236
    %300 = vmatpush.bf16.msra.mxu0 %v235
    %301 = vmatpush.bf16.msra.mxu0 %v234
    %302 = vmatpush.bf16.msra.mxu0 %v233
    %303 = vmatpush.bf16.msra.mxu0 %v232
    %304 = vmatmul.bf16.gmra.mxu0 %v116
    %v305 = vpop.f32.mrf.mxu0
    %v306 = vadd.f32 %v122, %v305
    %v307 = vpop.f32.mrf.mxu0
    %308 = vdwg.mxu0
    %309 = vmatpush.bf16.msra.mxu0 %v247
    %310 = vmatpush.bf16.msra.mxu0 %v246
    %311 = vmatpush.bf16.msra.mxu0 %v245
    %312 = vmatpush.bf16.msra.mxu0 %v244
    %313 = vmatpush.bf16.msra.mxu0 %v243
    %314 = vmatpush.bf16.msra.mxu0 %v242
    %315 = vmatpush.bf16.msra.mxu0 %v241
    %316 = vmatpush.bf16.msra.mxu0 %v240
    %317 = vmatmul.bf16.gmra.mxu0 %v117
    %v318 = vpop.f32.mrf.mxu0
    %v319 = vadd.f32 %v306, %v318
    %v320 = vpop.f32.mrf.mxu0
    %321 = vdwg.mxu0
    %322 = vmatpush.bf16.msra.mxu0 %v255
    %323 = vmatpush.bf16.msra.mxu0 %v254
    %324 = vmatpush.bf16.msra.mxu0 %v253
    %325 = vmatpush.bf16.msra.mxu0 %v252
    %326 = vmatpush.bf16.msra.mxu0 %v251
    %327 = vmatpush.bf16.msra.mxu0 %v250
    %328 = vmatpush.bf16.msra.mxu0 %v249
    %329 = vmatpush.bf16.msra.mxu0 %v248
    %330 = vmatmul.bf16.gmra.mxu0 %v118
    %v331 = vpop.f32.mrf.mxu0
    %v332 = vadd.f32 %v319, %v331
    %v333 = vpop.f32.mrf.mxu0
    %334 = vdwg.mxu0
    %335 = vmatpush.bf16.msra.mxu0 0
    %336 = vmatpush.bf16.msra.mxu0 0
    %337 = vmatpush.bf16.msra.mxu0 0
    %338 = vmatpush.bf16.msra.mxu0 0
    %339 = vmatpush.bf16.msra.mxu0 0
    %340 = vmatpush.bf16.msra.mxu0 %v294
    %341 = vmatpush.bf16.msra.mxu0 %v257
    %342 = vmatpush.bf16.msra.mxu0 %v256
    %343 = vmatmul.bf16.gmra.mxu0 %v287
    %v344 = vpop.f32.mrf.mxu0
    %v345 = vadd.f32 %v332, %v344
    %v346 = vpop.f32.mrf.mxu0
    %347 = vdwg.mxu0
    %s348 = scalar_lea.vmem %s1, 216
    %v349 = vld [vmem:[%s348] sm:$0xf]
    %v350 = vld [vmem:[%s348 + $0x4] sm:$0xf]
    %v351 = vld [vmem:[%s348 + $0x8] sm:$0xf]
    %v352 = vld [vmem:[%s348 + $0xc] sm:$0xf]
    %v353 = vld [vmem:[%s348 + $0x10] sm:$0xf]
    %v354 = vld [vmem:[%s348 + $0x14] sm:$0xf]
    %v355 = vld [vmem:[%s348 + $0x18] sm:$0xf]
    %v356 = vld [vmem:[%s348 + $0x1c] sm:$0xf]
    %v357 = vld [vmem:[%s348 + $0x20] sm:$0xf]
    %v358 = vld [vmem:[%s348 + $0x24] sm:$0xf]
    %v359 = vld [vmem:[%s348 + $0x28] sm:$0xf]
    %v360 = vld [vmem:[%s348 + $0x2c] sm:$0xf]
    %v361 = vld [vmem:[%s348 + $0x30] sm:$0xf]
    %v362 = vld [vmem:[%s348 + $0x34] sm:$0xf]
    %v363 = vld [vmem:[%s348 + $0x38] sm:$0xf]
    %v364 = vld [vmem:[%s348 + $0x3c] sm:$0xf]
    %v365 = vld [vmem:[%s348 + $0x40] sm:$0xf]
    %v366 = vld [vmem:[%s348 + $0x44] sm:$0xf]
    %v367 = vld [vmem:[%s348 + $0x48] sm:$0xf]
    %v368 = vld [vmem:[%s348 + $0x4c] sm:$0xf]
    %v369 = vld [vmem:[%s348 + $0x50] sm:$0xf]
    %v370 = vld [vmem:[%s348 + $0x54] sm:$0xf]
    %v371 = vld [vmem:[%s348 + $0x58] sm:$0xf]
    %v372 = vld [vmem:[%s348 + $0x5c] sm:$0xf]
    %v373 = vld [vmem:[%s348 + $0x60] sm:$0xf]
    %v374 = vld [vmem:[%s348 + $0x64] sm:$0xf]
    %v375 = vld [vmem:[%s348 + $0x68] sm:$0xf]
    %v376 = vld [vmem:[%s348 + $0x6c] sm:$0xf]
    %v377 = vld [vmem:[%s348 + $0x70] sm:$0xf]
    %v378 = vld [vmem:[%s348 + $0x74] sm:$0xf]
    %v379 = vld [vmem:[%s348 + $0x78] sm:$0xf]
    %v380 = vld [vmem:[%s348 + $0x7c] sm:$0xf]
    %v381 = vld [vmem:[%s348 + $0x80] sm:$0xf]
    %v382 = vld [vmem:[%s348 + $0x84] sm:$0xf]
    %v383 = vld [vmem:[%s348 + $0x88] sm:$0xf]
    %v384 = vld [vmem:[%s348 + $0x8c] sm:$0xf]
    %v385 = vld [vmem:[%s348 + $0x90] sm:$0xf]
    %v386 = vld [vmem:[%s348 + $0x94] sm:$0xf]
    %v387 = vld [vmem:[%s348 + $0x98] sm:$0xf]
    %v388 = vld [vmem:[%s348 + $0x9c] sm:$0xf]
    %v389 = vld [vmem:[%s348 + $0xa0] sm:$0xf]
    %v390 = vld [vmem:[%s348 + $0xa4] sm:$0xf]
    %v391 = vld [vmem:[%s348 + $0xa8] sm:$0xf]
    %v392 = vld [vmem:[%s348 + $0xac] sm:$0xf]
    %v393 = vld [vmem:[%s348 + $0xb0] sm:$0xf]
    %v394 = vld [vmem:[%s348 + $0xb4] sm:$0xf]
    %v395 = vld [vmem:[%s348 + $0xb8] sm:$0xf]
    %v396 = vld [vmem:[%s348 + $0xbc] sm:$0xf]
    %v397 = vld [vmem:[%s348 + $0xc0] sm:$0xf]
    %v398 = vld [vmem:[%s348 + $0xc4] sm:$0xf]
    %v399 = vld [vmem:[%s348 + $0xc8] sm:$0xf]
    %v400 = vld [vmem:[%s348 + $0xcc] sm:$0xf]
    %v401 = vld [vmem:[%s348 + $0xd0] sm:$0xf]
    %v402 = vld [vmem:[%s348 + $0xd4] sm:$0x7]
    %s403 = scalar_lea.vmem %s2, 1
    %v404 = vld [vmem:[%s403] sm:$0x1]
    %v406 = vperm.slane %v404, 0
    %v462 = vunpack.c.l.b16 %v349
    %v463 = vunpack.c.l.b16 %v350
    %v464 = vunpack.c.l.b16 %v351
    %v465 = vunpack.c.l.b16 %v352
    %v466 = vunpack.c.l.b16 %v353
    %v467 = vunpack.c.l.b16 %v354
    %v468 = vunpack.c.l.b16 %v355
    %v469 = vunpack.c.l.b16 %v356
    %v470 = vunpack.c.l.b16 %v357
    %v471 = vunpack.c.l.b16 %v358
    %v472 = vunpack.c.l.b16 %v359
    %v473 = vunpack.c.l.b16 %v360
    %v474 = vunpack.c.l.b16 %v361
    %v475 = vunpack.c.l.b16 %v362
    %v476 = vunpack.c.l.b16 %v363
    %v477 = vunpack.c.l.b16 %v364
    %v478 = vunpack.c.l.b16 %v365
    %v479 = vunpack.c.l.b16 %v366
    %v480 = vunpack.c.l.b16 %v367
    %v481 = vunpack.c.l.b16 %v368
    %v482 = vunpack.c.l.b16 %v369
    %v483 = vunpack.c.l.b16 %v370
    %v484 = vunpack.c.l.b16 %v371
    %v485 = vunpack.c.l.b16 %v372
    %v486 = vunpack.c.l.b16 %v373
    %v487 = vunpack.c.l.b16 %v374
    %v488 = vunpack.c.l.b16 %v375
    %v489 = vunpack.c.l.b16 %v376
    %v490 = vunpack.c.l.b16 %v377
    %v491 = vunpack.c.l.b16 %v378
    %v492 = vunpack.c.l.b16 %v379
    %v493 = vunpack.c.l.b16 %v380
    %v494 = vunpack.c.l.b16 %v381
    %v495 = vunpack.c.l.b16 %v382
    %v496 = vunpack.c.l.b16 %v383
    %v497 = vunpack.c.l.b16 %v384
    %v498 = vunpack.c.l.b16 %v385
    %v499 = vunpack.c.l.b16 %v386
    %v500 = vunpack.c.l.b16 %v387
    %v501 = vunpack.c.l.b16 %v388
    %v502 = vunpack.c.l.b16 %v389
    %v503 = vunpack.c.l.b16 %v390
    %v504 = vunpack.c.l.b16 %v391
    %v505 = vunpack.c.l.b16 %v392
    %v506 = vunpack.c.l.b16 %v393
    %v507 = vunpack.c.l.b16 %v394
    %v508 = vunpack.c.l.b16 %v395
    %v509 = vunpack.c.l.b16 %v396
    %v510 = vunpack.c.l.b16 %v397
    %v511 = vunpack.c.l.b16 %v398
    %v512 = vunpack.c.l.b16 %v399
    %v513 = vunpack.c.l.b16 %v400
    %v514 = vunpack.c.l.b16 %v401
    %v515 = vunpack.c.l.b16 %v402
    %v516 = vpack.c.b16 %v463, %v462
    %v517 = vpack.c.b16 %v465, %v464
    %v518 = vpack.c.b16 %v467, %v466
    %v519 = vpack.c.b16 %v469, %v468
    %v520 = vpack.c.b16 %v471, %v470
    %v521 = vpack.c.b16 %v473, %v472
    %v522 = vpack.c.b16 %v475, %v474
    %v523 = vpack.c.b16 %v477, %v476
    %v524 = vpack.c.b16 %v479, %v478
    %v525 = vpack.c.b16 %v481, %v480
    %v526 = vpack.c.b16 %v483, %v482
    %v527 = vpack.c.b16 %v485, %v484
    %v528 = vpack.c.b16 %v487, %v486
    %v529 = vpack.c.b16 %v489, %v488
    %v530 = vpack.c.b16 %v491, %v490
    %v531 = vpack.c.b16 %v493, %v492
    %v532 = vpack.c.b16 %v495, %v494
    %v533 = vpack.c.b16 %v497, %v496
    %v534 = vpack.c.b16 %v499, %v498
    %v535 = vpack.c.b16 %v501, %v500
    %v536 = vpack.c.b16 %v503, %v502
    %v537 = vpack.c.b16 %v505, %v504
    %v538 = vpack.c.b16 %v507, %v506
    %v539 = vpack.c.b16 %v509, %v508
    %v540 = vpack.c.b16 %v511, %v510
    %v541 = vpack.c.b16 %v513, %v512
    %v542 = vpack.c.b16 %v515, %v514
    %v570 = vand.u32 %v542, %v292
    %572 = vmatpush.bf16.msra.mxu0 %v523
    %573 = vmatpush.bf16.msra.mxu0 %v522
    %574 = vmatpush.bf16.msra.mxu0 %v521
    %575 = vmatpush.bf16.msra.mxu0 %v520
    %576 = vmatpush.bf16.msra.mxu0 %v519
    %577 = vmatpush.bf16.msra.mxu0 %v518
    %578 = vmatpush.bf16.msra.mxu0 %v517
    %579 = vmatpush.bf16.msra.mxu0 %v516
    %580 = vmatmul.bf16.gmra.mxu0 %v116
    %v581 = vpop.f32.mrf.mxu0
    %v582 = vadd.f32 %v406, %v581
    %v583 = vpop.f32.mrf.mxu0
    %584 = vdwg.mxu0
    %585 = vmatpush.bf16.msra.mxu0 %v531
    %586 = vmatpush.bf16.msra.mxu0 %v530
    %587 = vmatpush.bf16.msra.mxu0 %v529
    %588 = vmatpush.bf16.msra.mxu0 %v528
    %589 = vmatpush.bf16.msra.mxu0 %v527
    %590 = vmatpush.bf16.msra.mxu0 %v526
    %591 = vmatpush.bf16.msra.mxu0 %v525
    %592 = vmatpush.bf16.msra.mxu0 %v524
    %593 = vmatmul.bf16.gmra.mxu0 %v117
    %v594 = vpop.f32.mrf.mxu0
    %v595 = vadd.f32 %v582, %v594
    %v596 = vpop.f32.mrf.mxu0
    %597 = vdwg.mxu0
    %598 = vmatpush.bf16.msra.mxu0 %v539
    %599 = vmatpush.bf16.msra.mxu0 %v538
    %600 = vmatpush.bf16.msra.mxu0 %v537
    %601 = vmatpush.bf16.msra.mxu0 %v536
    %602 = vmatpush.bf16.msra.mxu0 %v535
    %603 = vmatpush.bf16.msra.mxu0 %v534
    %604 = vmatpush.bf16.msra.mxu0 %v533
    %605 = vmatpush.bf16.msra.mxu0 %v532
    %606 = vmatmul.bf16.gmra.mxu0 %v118
    %v607 = vpop.f32.mrf.mxu0
    %v608 = vadd.f32 %v595, %v607
    %v609 = vpop.f32.mrf.mxu0
    %610 = vdwg.mxu0
    %611 = vmatpush.bf16.msra.mxu0 0
    %612 = vmatpush.bf16.msra.mxu0 0
    %613 = vmatpush.bf16.msra.mxu0 0
    %614 = vmatpush.bf16.msra.mxu0 0
    %615 = vmatpush.bf16.msra.mxu0 0
    %616 = vmatpush.bf16.msra.mxu0 %v570
    %617 = vmatpush.bf16.msra.mxu0 %v541
    %618 = vmatpush.bf16.msra.mxu0 %v540
    %619 = vmatmul.bf16.gmra.mxu0 %v287
    %v620 = vpop.f32.mrf.mxu0
    %v621 = vadd.f32 %v608, %v620
    %v622 = vpop.f32.mrf.mxu0
    %623 = vdwg.mxu0
    %s624 = scalar_lea.vmem %s1, 432
    %v625 = vld [vmem:[%s624] sm:$0xf]
    %v626 = vld [vmem:[%s624 + $0x4] sm:$0xf]
    %v627 = vld [vmem:[%s624 + $0x8] sm:$0xf]
    %v628 = vld [vmem:[%s624 + $0xc] sm:$0xf]
    %v629 = vld [vmem:[%s624 + $0x10] sm:$0xf]
    %v630 = vld [vmem:[%s624 + $0x14] sm:$0xf]
    %v631 = vld [vmem:[%s624 + $0x18] sm:$0xf]
    %v632 = vld [vmem:[%s624 + $0x1c] sm:$0xf]
    %v633 = vld [vmem:[%s624 + $0x20] sm:$0xf]
    %v634 = vld [vmem:[%s624 + $0x24] sm:$0xf]
    %v635 = vld [vmem:[%s624 + $0x28] sm:$0xf]
    %v636 = vld [vmem:[%s624 + $0x2c] sm:$0xf]
    %v637 = vld [vmem:[%s624 + $0x30] sm:$0xf]
    %v638 = vld [vmem:[%s624 + $0x34] sm:$0xf]
    %v639 = vld [vmem:[%s624 + $0x38] sm:$0xf]
    %v640 = vld [vmem:[%s624 + $0x3c] sm:$0xf]
    %v641 = vld [vmem:[%s624 + $0x40] sm:$0xf]
    %v642 = vld [vmem:[%s624 + $0x44] sm:$0xf]
    %v643 = vld [vmem:[%s624 + $0x48] sm:$0xf]
    %v644 = vld [vmem:[%s624 + $0x4c] sm:$0xf]
    %v645 = vld [vmem:[%s624 + $0x50] sm:$0xf]
    %v646 = vld [vmem:[%s624 + $0x54] sm:$0xf]
    %v647 = vld [vmem:[%s624 + $0x58] sm:$0xf]
    %v648 = vld [vmem:[%s624 + $0x5c] sm:$0xf]
    %v649 = vld [vmem:[%s624 + $0x60] sm:$0xf]
    %v650 = vld [vmem:[%s624 + $0x64] sm:$0xf]
    %v651 = vld [vmem:[%s624 + $0x68] sm:$0xf]
    %v652 = vld [vmem:[%s624 + $0x6c] sm:$0xf]
    %v653 = vld [vmem:[%s624 + $0x70] sm:$0xf]
    %v654 = vld [vmem:[%s624 + $0x74] sm:$0xf]
    %v655 = vld [vmem:[%s624 + $0x78] sm:$0xf]
    %v656 = vld [vmem:[%s624 + $0x7c] sm:$0xf]
    %v657 = vld [vmem:[%s624 + $0x80] sm:$0xf]
    %v658 = vld [vmem:[%s624 + $0x84] sm:$0xf]
    %v659 = vld [vmem:[%s624 + $0x88] sm:$0xf]
    %v660 = vld [vmem:[%s624 + $0x8c] sm:$0xf]
    %v661 = vld [vmem:[%s624 + $0x90] sm:$0xf]
    %v662 = vld [vmem:[%s624 + $0x94] sm:$0xf]
    %v663 = vld [vmem:[%s624 + $0x98] sm:$0xf]
    %v664 = vld [vmem:[%s624 + $0x9c] sm:$0xf]
    %v665 = vld [vmem:[%s624 + $0xa0] sm:$0xf]
    %v666 = vld [vmem:[%s624 + $0xa4] sm:$0xf]
    %v667 = vld [vmem:[%s624 + $0xa8] sm:$0xf]
    %v668 = vld [vmem:[%s624 + $0xac] sm:$0xf]
    %v669 = vld [vmem:[%s624 + $0xb0] sm:$0xf]
    %v670 = vld [vmem:[%s624 + $0xb4] sm:$0xf]
    %v671 = vld [vmem:[%s624 + $0xb8] sm:$0xf]
    %v672 = vld [vmem:[%s624 + $0xbc] sm:$0xf]
    %v673 = vld [vmem:[%s624 + $0xc0] sm:$0xf]
    %v674 = vld [vmem:[%s624 + $0xc4] sm:$0xf]
    %v675 = vld [vmem:[%s624 + $0xc8] sm:$0xf]
    %v676 = vld [vmem:[%s624 + $0xcc] sm:$0xf]
    %v677 = vld [vmem:[%s624 + $0xd0] sm:$0xf]
    %v678 = vld [vmem:[%s624 + $0xd4] sm:$0x7]
    %s679 = scalar_lea.vmem %s2, 2
    %v680 = vld [vmem:[%s679] sm:$0x1]
    %v682 = vperm.slane %v680, 0
    %v738 = vunpack.c.l.b16 %v625
    %v739 = vunpack.c.l.b16 %v626
    %v740 = vunpack.c.l.b16 %v627
    %v741 = vunpack.c.l.b16 %v628
    %v742 = vunpack.c.l.b16 %v629
    %v743 = vunpack.c.l.b16 %v630
    %v744 = vunpack.c.l.b16 %v631
    %v745 = vunpack.c.l.b16 %v632
    %v746 = vunpack.c.l.b16 %v633
    %v747 = vunpack.c.l.b16 %v634
    %v748 = vunpack.c.l.b16 %v635
    %v749 = vunpack.c.l.b16 %v636
    %v750 = vunpack.c.l.b16 %v637
    %v751 = vunpack.c.l.b16 %v638
    %v752 = vunpack.c.l.b16 %v639
    %v753 = vunpack.c.l.b16 %v640
    %v754 = vunpack.c.l.b16 %v641
    %v755 = vunpack.c.l.b16 %v642
    %v756 = vunpack.c.l.b16 %v643
    %v757 = vunpack.c.l.b16 %v644
    %v758 = vunpack.c.l.b16 %v645
    %v759 = vunpack.c.l.b16 %v646
    %v760 = vunpack.c.l.b16 %v647
    %v761 = vunpack.c.l.b16 %v648
    %v762 = vunpack.c.l.b16 %v649
    %v763 = vunpack.c.l.b16 %v650
    %v764 = vunpack.c.l.b16 %v651
    %v765 = vunpack.c.l.b16 %v652
    %v766 = vunpack.c.l.b16 %v653
    %v767 = vunpack.c.l.b16 %v654
    %v768 = vunpack.c.l.b16 %v655
    %v769 = vunpack.c.l.b16 %v656
    %v770 = vunpack.c.l.b16 %v657
    %v771 = vunpack.c.l.b16 %v658
    %v772 = vunpack.c.l.b16 %v659
    %v773 = vunpack.c.l.b16 %v660
    %v774 = vunpack.c.l.b16 %v661
    %v775 = vunpack.c.l.b16 %v662
    %v776 = vunpack.c.l.b16 %v663
    %v777 = vunpack.c.l.b16 %v664
    %v778 = vunpack.c.l.b16 %v665
    %v779 = vunpack.c.l.b16 %v666
    %v780 = vunpack.c.l.b16 %v667
    %v781 = vunpack.c.l.b16 %v668
    %v782 = vunpack.c.l.b16 %v669
    %v783 = vunpack.c.l.b16 %v670
    %v784 = vunpack.c.l.b16 %v671
    %v785 = vunpack.c.l.b16 %v672
    %v786 = vunpack.c.l.b16 %v673
    %v787 = vunpack.c.l.b16 %v674
    %v788 = vunpack.c.l.b16 %v675
    %v789 = vunpack.c.l.b16 %v676
    %v790 = vunpack.c.l.b16 %v677
    %v791 = vunpack.c.l.b16 %v678
    %v792 = vpack.c.b16 %v739, %v738
    %v793 = vpack.c.b16 %v741, %v740
    %v794 = vpack.c.b16 %v743, %v742
    %v795 = vpack.c.b16 %v745, %v744
    %v796 = vpack.c.b16 %v747, %v746
    %v797 = vpack.c.b16 %v749, %v748
    %v798 = vpack.c.b16 %v751, %v750
    %v799 = vpack.c.b16 %v753, %v752
    %v800 = vpack.c.b16 %v755, %v754
    %v801 = vpack.c.b16 %v757, %v756
    %v802 = vpack.c.b16 %v759, %v758
    %v803 = vpack.c.b16 %v761, %v760
    %v804 = vpack.c.b16 %v763, %v762
    %v805 = vpack.c.b16 %v765, %v764
    %v806 = vpack.c.b16 %v767, %v766
    %v807 = vpack.c.b16 %v769, %v768
    %v808 = vpack.c.b16 %v771, %v770
    %v809 = vpack.c.b16 %v773, %v772
    %v810 = vpack.c.b16 %v775, %v774
    %v811 = vpack.c.b16 %v777, %v776
    %v812 = vpack.c.b16 %v779, %v778
    %v813 = vpack.c.b16 %v781, %v780
    %v814 = vpack.c.b16 %v783, %v782
    %v815 = vpack.c.b16 %v785, %v784
    %v816 = vpack.c.b16 %v787, %v786
    %v817 = vpack.c.b16 %v789, %v788
    %v818 = vpack.c.b16 %v791, %v790
    %v846 = vand.u32 %v818, %v292
    %848 = vmatpush.bf16.msra.mxu0 %v799
    %849 = vmatpush.bf16.msra.mxu0 %v798
    %850 = vmatpush.bf16.msra.mxu0 %v797
    %851 = vmatpush.bf16.msra.mxu0 %v796
    %852 = vmatpush.bf16.msra.mxu0 %v795
    %853 = vmatpush.bf16.msra.mxu0 %v794
    %854 = vmatpush.bf16.msra.mxu0 %v793
    %855 = vmatpush.bf16.msra.mxu0 %v792
    %856 = vmatmul.bf16.gmra.mxu0 %v116
    %v857 = vpop.f32.mrf.mxu0
    %v858 = vadd.f32 %v682, %v857
    %v859 = vpop.f32.mrf.mxu0
    %860 = vdwg.mxu0
    %861 = vmatpush.bf16.msra.mxu0 %v807
    %862 = vmatpush.bf16.msra.mxu0 %v806
    %863 = vmatpush.bf16.msra.mxu0 %v805
    %864 = vmatpush.bf16.msra.mxu0 %v804
    %865 = vmatpush.bf16.msra.mxu0 %v803
    %866 = vmatpush.bf16.msra.mxu0 %v802
    %867 = vmatpush.bf16.msra.mxu0 %v801
    %868 = vmatpush.bf16.msra.mxu0 %v800
    %869 = vmatmul.bf16.gmra.mxu0 %v117
    %v870 = vpop.f32.mrf.mxu0
    %v871 = vadd.f32 %v858, %v870
    %v872 = vpop.f32.mrf.mxu0
    %873 = vdwg.mxu0
    %874 = vmatpush.bf16.msra.mxu0 %v815
    %875 = vmatpush.bf16.msra.mxu0 %v814
    %876 = vmatpush.bf16.msra.mxu0 %v813
    %877 = vmatpush.bf16.msra.mxu0 %v812
    %878 = vmatpush.bf16.msra.mxu0 %v811
    %879 = vmatpush.bf16.msra.mxu0 %v810
    %880 = vmatpush.bf16.msra.mxu0 %v809
    %881 = vmatpush.bf16.msra.mxu0 %v808
    %882 = vmatmul.bf16.gmra.mxu0 %v118
    %v883 = vpop.f32.mrf.mxu0
    %v884 = vadd.f32 %v871, %v883
    %v885 = vpop.f32.mrf.mxu0
    %886 = vdwg.mxu0
    %887 = vmatpush.bf16.msra.mxu0 0
    %888 = vmatpush.bf16.msra.mxu0 0
    %889 = vmatpush.bf16.msra.mxu0 0
    %890 = vmatpush.bf16.msra.mxu0 0
    %891 = vmatpush.bf16.msra.mxu0 0
    %892 = vmatpush.bf16.msra.mxu0 %v846
    %893 = vmatpush.bf16.msra.mxu0 %v817
    %894 = vmatpush.bf16.msra.mxu0 %v816
    %895 = vmatmul.bf16.gmra.mxu0 %v287
    %v896 = vpop.f32.mrf.mxu0
    %v897 = vadd.f32 %v884, %v896
    %v898 = vpop.f32.mrf.mxu0
    %899 = vdwg.mxu0
    %v900 = vxor.u32 %v345, 2147483648
    %v901 = vmul.f32 %v900, 1.442695
    %v902 = vpow.pop %v901
    %v903 = vadd.f32 %v902, 1.0
    %v904 = vrcp.pop %v903
    %v905 = vmul.f32 %v903, %v904
    %v906 = vsub.f32 1.0, %v905
    %v907 = vmul.f32 %v904, %v906
    %v908 = vadd.f32 %v904, %v907
    %vm909 = vweird.f32 %v903
    %vm910 = vweird.f32 %v904
    %vm911 = vmor %vm909, %vm910
    %v912 = vsel %vm911, %v904, %v908
    %v913 = vand.u32 2147483647, %v903
    %vm914 = vcmp.eq.f32.partialorder %v913, 8.507059e+37
    %v915 = vand.u32 %v903, 2147483648
    %v916 = vor.u32 1.1754944e-38, %v915
    %v917 = vsel %vm914, %v916, %v912
    %v918 = vmul.f32 1.0, %v917
    %v919 = vtanh.pop %v621
    %v920 = vmul.f32 %v918, %v919
    %v921 = vxor.u32 %v897, 2147483648
    %v922 = vmul.f32 %v921, 1.442695
    %v923 = vpow.pop %v922
    %v924 = vadd.f32 %v923, 1.0
    %v925 = vrcp.pop %v924
    %v926 = vmul.f32 %v924, %v925
    %v927 = vsub.f32 1.0, %v926
    %v928 = vmul.f32 %v925, %v927
    %v929 = vadd.f32 %v925, %v928
    %vm930 = vweird.f32 %v924
    %vm931 = vweird.f32 %v925
    %vm932 = vmor %vm930, %vm931
    %v933 = vsel %vm932, %v925, %v929
    %v934 = vand.u32 2147483647, %v924
    %vm935 = vcmp.eq.f32.partialorder %v934, 8.507059e+37
    %v936 = vand.u32 %v924, 2147483648
    %v937 = vor.u32 1.1754944e-38, %v936
    %v938 = vsel %vm935, %v937, %v933
    %v939 = vmul.f32 1.0, %v938
    %v940 = vtanh.pop %v920
    %v941 = vmul.f32 %v939, %v940
    %v942 = vld [vmem:[%s3] sm:$0xf]
    %v943 = vld [vmem:[%s3 + $0x4] sm:$0xf]
    %v944 = vld [vmem:[%s3 + $0x8] sm:$0xf]
    %v945 = vld [vmem:[%s3 + $0xc] sm:$0xf]
    %v946 = vld [vmem:[%s3 + $0x10] sm:$0xf]
    %v947 = vld [vmem:[%s3 + $0x14] sm:$0xf]
    %v948 = vld [vmem:[%s3 + $0x18] sm:$0xf]
    %v949 = vld [vmem:[%s3 + $0x1c] sm:$0xf]
    %v950 = vpack.c.bf16 %v941, %v941
    %v951 = vld [vmem:[%s4] sm:$0x1]
    %v953 = vperm.slane %v951, 0
    %v963 = vunpack.c.l.b16 %v942
    %v964 = vunpack.c.l.b16 %v943
    %v965 = vunpack.c.l.b16 %v944
    %v966 = vunpack.c.l.b16 %v945
    %v967 = vunpack.c.l.b16 %v946
    %v968 = vunpack.c.l.b16 %v947
    %v969 = vunpack.c.l.b16 %v948
    %v970 = vunpack.c.l.b16 %v949
    %v971 = vpack.c.b16 %v964, %v963
    %v972 = vpack.c.b16 %v966, %v965
    %v973 = vpack.c.b16 %v968, %v967
    %v974 = vpack.c.b16 %v970, %v969
    %vm979 = vcmask 523264
    %v981 = vsel %vm979, %v950, 0
    %983 = vmatpush.bf16.msra.mxu0 0
    %984 = vmatpush.bf16.msra.mxu0 0
    %985 = vmatpush.bf16.msra.mxu0 0
    %986 = vmatpush.bf16.msra.mxu0 0
    %987 = vmatpush.bf16.msra.mxu0 %v974
    %988 = vmatpush.bf16.msra.mxu0 %v973
    %989 = vmatpush.bf16.msra.mxu0 %v972
    %990 = vmatpush.bf16.msra.mxu0 %v971
    %991 = vmatmul.bf16.gmra.mxu0 %v981
    %v992 = vpop.f32.mrf.mxu0
    %v993 = vadd.f32 %v953, %v992
    %v994 = vpop.f32.mrf.mxu0
    %995 = vdwg.mxu0
    %s996 = scalar_lea.vmem %s3, 32
    %v997 = vld [vmem:[%s996] sm:$0xf]
    %v998 = vld [vmem:[%s996 + $0x4] sm:$0xf]
    %v999 = vld [vmem:[%s996 + $0x8] sm:$0xf]
    %v1000 = vld [vmem:[%s996 + $0xc] sm:$0xf]
    %v1001 = vld [vmem:[%s996 + $0x10] sm:$0xf]
    %v1002 = vld [vmem:[%s996 + $0x14] sm:$0xf]
    %v1003 = vld [vmem:[%s996 + $0x18] sm:$0xf]
    %v1004 = vld [vmem:[%s996 + $0x1c] sm:$0xf]
    %s1005 = scalar_lea.vmem %s4, 1
    %v1006 = vld [vmem:[%s1005] sm:$0x1]
    %v1008 = vperm.slane %v1006, 0
    %v1018 = vunpack.c.l.b16 %v997
    %v1019 = vunpack.c.l.b16 %v998
    %v1020 = vunpack.c.l.b16 %v999
    %v1021 = vunpack.c.l.b16 %v1000
    %v1022 = vunpack.c.l.b16 %v1001
    %v1023 = vunpack.c.l.b16 %v1002
    %v1024 = vunpack.c.l.b16 %v1003
    %v1025 = vunpack.c.l.b16 %v1004
    %v1026 = vpack.c.b16 %v1019, %v1018
    %v1027 = vpack.c.b16 %v1021, %v1020
    %v1028 = vpack.c.b16 %v1023, %v1022
    %v1029 = vpack.c.b16 %v1025, %v1024
    %1034 = vmatpush.bf16.msra.mxu0 0
    %1035 = vmatpush.bf16.msra.mxu0 0
    %1036 = vmatpush.bf16.msra.mxu0 0
    %1037 = vmatpush.bf16.msra.mxu0 0
    %1038 = vmatpush.bf16.msra.mxu0 %v1029
    %1039 = vmatpush.bf16.msra.mxu0 %v1028
    %1040 = vmatpush.bf16.msra.mxu0 %v1027
    %1041 = vmatpush.bf16.msra.mxu0 %v1026
    %1042 = vmatmul.bf16.gmra.mxu0 %v981
    %v1043 = vpop.f32.mrf.mxu0
    %v1044 = vadd.f32 %v1008, %v1043
    %v1045 = vpop.f32.mrf.mxu0
    %1046 = vdwg.mxu0
    %s1047 = scalar_lea.vmem %s3, 64
    %v1048 = vld [vmem:[%s1047] sm:$0xf]
    %v1049 = vld [vmem:[%s1047 + $0x4] sm:$0xf]
    %v1050 = vld [vmem:[%s1047 + $0x8] sm:$0xf]
    %v1051 = vld [vmem:[%s1047 + $0xc] sm:$0xf]
    %v1052 = vld [vmem:[%s1047 + $0x10] sm:$0xf]
    %v1053 = vld [vmem:[%s1047 + $0x14] sm:$0xf]
    %v1054 = vld [vmem:[%s1047 + $0x18] sm:$0xf]
    %v1055 = vld [vmem:[%s1047 + $0x1c] sm:$0xf]
    %s1056 = scalar_lea.vmem %s4, 2
    %v1057 = vld [vmem:[%s1056] sm:$0x1]
    %v1059 = vperm.slane %v1057, 0
    %v1069 = vunpack.c.l.b16 %v1048
    %v1070 = vunpack.c.l.b16 %v1049
    %v1071 = vunpack.c.l.b16 %v1050
    %v1072 = vunpack.c.l.b16 %v1051
    %v1073 = vunpack.c.l.b16 %v1052
    %v1074 = vunpack.c.l.b16 %v1053
    %v1075 = vunpack.c.l.b16 %v1054
    %v1076 = vunpack.c.l.b16 %v1055
    %v1077 = vpack.c.b16 %v1070, %v1069
    %v1078 = vpack.c.b16 %v1072, %v1071
    %v1079 = vpack.c.b16 %v1074, %v1073
    %v1080 = vpack.c.b16 %v1076, %v1075
    %1085 = vmatpush.bf16.msra.mxu0 0
    %1086 = vmatpush.bf16.msra.mxu0 0
    %1087 = vmatpush.bf16.msra.mxu0 0
    %1088 = vmatpush.bf16.msra.mxu0 0
    %1089 = vmatpush.bf16.msra.mxu0 %v1080
    %1090 = vmatpush.bf16.msra.mxu0 %v1079
    %1091 = vmatpush.bf16.msra.mxu0 %v1078
    %1092 = vmatpush.bf16.msra.mxu0 %v1077
    %1093 = vmatmul.bf16.gmra.mxu0 %v981
    %v1094 = vpop.f32.mrf.mxu0
    %v1095 = vadd.f32 %v1059, %v1094
    %v1096 = vpop.f32.mrf.mxu0
    %1097 = vdwg.mxu0
    %v1098 = vxor.u32 %v993, 2147483648
    %v1099 = vmul.f32 %v1098, 1.442695
    %v1100 = vpow.pop %v1099
    %v1101 = vadd.f32 %v1100, 1.0
    %v1102 = vrcp.pop %v1101
    %v1103 = vmul.f32 %v1101, %v1102
    %v1104 = vsub.f32 1.0, %v1103
    %v1105 = vmul.f32 %v1102, %v1104
    %v1106 = vadd.f32 %v1102, %v1105
    %vm1107 = vweird.f32 %v1101
    %vm1108 = vweird.f32 %v1102
    %vm1109 = vmor %vm1107, %vm1108
    %v1110 = vsel %vm1109, %v1102, %v1106
    %v1111 = vand.u32 2147483647, %v1101
    %vm1112 = vcmp.eq.f32.partialorder %v1111, 8.507059e+37
    %v1113 = vand.u32 %v1101, 2147483648
    %v1114 = vor.u32 1.1754944e-38, %v1113
    %v1115 = vsel %vm1112, %v1114, %v1110
    %v1116 = vmul.f32 1.0, %v1115
    %v1117 = vtanh.pop %v1044
    %v1118 = vmul.f32 %v1116, %v1117
    %v1119 = vxor.u32 %v1095, 2147483648
    %v1120 = vmul.f32 %v1119, 1.442695
    %v1121 = vpow.pop %v1120
    %v1122 = vadd.f32 %v1121, 1.0
    %v1123 = vrcp.pop %v1122
    %v1124 = vmul.f32 %v1122, %v1123
    %v1125 = vsub.f32 1.0, %v1124
    %v1126 = vmul.f32 %v1123, %v1125
    %v1127 = vadd.f32 %v1123, %v1126
    %vm1128 = vweird.f32 %v1122
    %vm1129 = vweird.f32 %v1123
    %vm1130 = vmor %vm1128, %vm1129
    %v1131 = vsel %vm1130, %v1123, %v1127
    %v1132 = vand.u32 2147483647, %v1122
    %vm1133 = vcmp.eq.f32.partialorder %v1132, 8.507059e+37
    %v1134 = vand.u32 %v1122, 2147483648
    %v1135 = vor.u32 1.1754944e-38, %v1134
    %v1136 = vsel %vm1133, %v1135, %v1131
    %v1137 = vmul.f32 1.0, %v1136
    %v1138 = vtanh.pop %v1118
    %v1139 = vmul.f32 %v1137, %v1138
    %v1140 = vld [vmem:[%s5] sm:$0xf]
    %v1141 = vld [vmem:[%s5 + $0x4] sm:$0xf]
    %v1142 = vld [vmem:[%s5 + $0x8] sm:$0xf]
    %v1143 = vld [vmem:[%s5 + $0xc] sm:$0xf]
    %v1144 = vld [vmem:[%s5 + $0x10] sm:$0xf]
    %v1145 = vld [vmem:[%s5 + $0x14] sm:$0xf]
    %v1146 = vld [vmem:[%s5 + $0x18] sm:$0xf]
    %v1147 = vld [vmem:[%s5 + $0x1c] sm:$0xf]
    %v1148 = vpack.c.bf16 %v1139, %v1139
    %v1149 = vld [vmem:[%s6] sm:$0x1]
    %v1151 = vperm.slane %v1149, 0
    %v1161 = vunpack.c.l.b16 %v1140
    %v1162 = vunpack.c.l.b16 %v1141
    %v1163 = vunpack.c.l.b16 %v1142
    %v1164 = vunpack.c.l.b16 %v1143
    %v1165 = vunpack.c.l.b16 %v1144
    %v1166 = vunpack.c.l.b16 %v1145
    %v1167 = vunpack.c.l.b16 %v1146
    %v1168 = vunpack.c.l.b16 %v1147
    %v1169 = vpack.c.b16 %v1162, %v1161
    %v1170 = vpack.c.b16 %v1164, %v1163
    %v1171 = vpack.c.b16 %v1166, %v1165
    %v1172 = vpack.c.b16 %v1168, %v1167
    %v1178 = vsel %vm979, %v1148, 0
    %1180 = vmatpush.bf16.msra.mxu0 0
    %1181 = vmatpush.bf16.msra.mxu0 0
    %1182 = vmatpush.bf16.msra.mxu0 0
    %1183 = vmatpush.bf16.msra.mxu0 0
    %1184 = vmatpush.bf16.msra.mxu0 %v1172
    %1185 = vmatpush.bf16.msra.mxu0 %v1171
    %1186 = vmatpush.bf16.msra.mxu0 %v1170
    %1187 = vmatpush.bf16.msra.mxu0 %v1169
    %1188 = vmatmul.bf16.gmra.mxu0 %v1178
    %v1189 = vpop.f32.mrf.mxu0
    %v1190 = vadd.f32 %v1151, %v1189
    %v1191 = vpop.f32.mrf.mxu0
    %1192 = vdwg.mxu0
    %s1193 = scalar_lea.vmem %s5, 32
    %v1194 = vld [vmem:[%s1193] sm:$0xf]
    %v1195 = vld [vmem:[%s1193 + $0x4] sm:$0xf]
    %v1196 = vld [vmem:[%s1193 + $0x8] sm:$0xf]
    %v1197 = vld [vmem:[%s1193 + $0xc] sm:$0xf]
    %v1198 = vld [vmem:[%s1193 + $0x10] sm:$0xf]
    %v1199 = vld [vmem:[%s1193 + $0x14] sm:$0xf]
    %v1200 = vld [vmem:[%s1193 + $0x18] sm:$0xf]
    %v1201 = vld [vmem:[%s1193 + $0x1c] sm:$0xf]
    %s1202 = scalar_lea.vmem %s6, 1
    %v1203 = vld [vmem:[%s1202] sm:$0x1]
    %v1205 = vperm.slane %v1203, 0
    %v1215 = vunpack.c.l.b16 %v1194
    %v1216 = vunpack.c.l.b16 %v1195
    %v1217 = vunpack.c.l.b16 %v1196
    %v1218 = vunpack.c.l.b16 %v1197
    %v1219 = vunpack.c.l.b16 %v1198
    %v1220 = vunpack.c.l.b16 %v1199
    %v1221 = vunpack.c.l.b16 %v1200
    %v1222 = vunpack.c.l.b16 %v1201
    %v1223 = vpack.c.b16 %v1216, %v1215
    %v1224 = vpack.c.b16 %v1218, %v1217
    %v1225 = vpack.c.b16 %v1220, %v1219
    %v1226 = vpack.c.b16 %v1222, %v1221
    %1231 = vmatpush.bf16.msra.mxu0 0
    %1232 = vmatpush.bf16.msra.mxu0 0
    %1233 = vmatpush.bf16.msra.mxu0 0
    %1234 = vmatpush.bf16.msra.mxu0 0
    %1235 = vmatpush.bf16.msra.mxu0 %v1226
    %1236 = vmatpush.bf16.msra.mxu0 %v1225
    %1237 = vmatpush.bf16.msra.mxu0 %v1224
    %1238 = vmatpush.bf16.msra.mxu0 %v1223
    %1239 = vmatmul.bf16.gmra.mxu0 %v1178
    %v1240 = vpop.f32.mrf.mxu0
    %v1241 = vadd.f32 %v1205, %v1240
    %v1242 = vpop.f32.mrf.mxu0
    %1243 = vdwg.mxu0
    %s1244 = scalar_lea.vmem %s5, 64
    %v1245 = vld [vmem:[%s1244] sm:$0xf]
    %v1246 = vld [vmem:[%s1244 + $0x4] sm:$0xf]
    %v1247 = vld [vmem:[%s1244 + $0x8] sm:$0xf]
    %v1248 = vld [vmem:[%s1244 + $0xc] sm:$0xf]
    %v1249 = vld [vmem:[%s1244 + $0x10] sm:$0xf]
    %v1250 = vld [vmem:[%s1244 + $0x14] sm:$0xf]
    %v1251 = vld [vmem:[%s1244 + $0x18] sm:$0xf]
    %v1252 = vld [vmem:[%s1244 + $0x1c] sm:$0xf]
    %s1253 = scalar_lea.vmem %s6, 2
    %v1254 = vld [vmem:[%s1253] sm:$0x1]
    %v1256 = vperm.slane %v1254, 0
    %v1266 = vunpack.c.l.b16 %v1245
    %v1267 = vunpack.c.l.b16 %v1246
    %v1268 = vunpack.c.l.b16 %v1247
    %v1269 = vunpack.c.l.b16 %v1248
    %v1270 = vunpack.c.l.b16 %v1249
    %v1271 = vunpack.c.l.b16 %v1250
    %v1272 = vunpack.c.l.b16 %v1251
    %v1273 = vunpack.c.l.b16 %v1252
    %v1274 = vpack.c.b16 %v1267, %v1266
    %v1275 = vpack.c.b16 %v1269, %v1268
    %v1276 = vpack.c.b16 %v1271, %v1270
    %v1277 = vpack.c.b16 %v1273, %v1272
    %1282 = vmatpush.bf16.msra.mxu0 0
    %1283 = vmatpush.bf16.msra.mxu0 0
    %1284 = vmatpush.bf16.msra.mxu0 0
    %1285 = vmatpush.bf16.msra.mxu0 0
    %1286 = vmatpush.bf16.msra.mxu0 %v1277
    %1287 = vmatpush.bf16.msra.mxu0 %v1276
    %1288 = vmatpush.bf16.msra.mxu0 %v1275
    %1289 = vmatpush.bf16.msra.mxu0 %v1274
    %1290 = vmatmul.bf16.gmra.mxu0 %v1178
    %v1291 = vpop.f32.mrf.mxu0
    %v1292 = vadd.f32 %v1256, %v1291
    %v1293 = vpop.f32.mrf.mxu0
    %1294 = vdwg.mxu0
    %v1295 = vxor.u32 %v1190, 2147483648
    %v1296 = vmul.f32 %v1295, 1.442695
    %v1297 = vpow.pop %v1296
    %v1298 = vadd.f32 %v1297, 1.0
    %v1299 = vrcp.pop %v1298
    %v1300 = vmul.f32 %v1298, %v1299
    %v1301 = vsub.f32 1.0, %v1300
    %v1302 = vmul.f32 %v1299, %v1301
    %v1303 = vadd.f32 %v1299, %v1302
    %vm1304 = vweird.f32 %v1298
    %vm1305 = vweird.f32 %v1299
    %vm1306 = vmor %vm1304, %vm1305
    %v1307 = vsel %vm1306, %v1299, %v1303
    %v1308 = vand.u32 2147483647, %v1298
    %vm1309 = vcmp.eq.f32.partialorder %v1308, 8.507059e+37
    %v1310 = vand.u32 %v1298, 2147483648
    %v1311 = vor.u32 1.1754944e-38, %v1310
    %v1312 = vsel %vm1309, %v1311, %v1307
    %v1313 = vmul.f32 1.0, %v1312
    %v1314 = vtanh.pop %v1241
    %v1315 = vmul.f32 %v1313, %v1314
    %v1316 = vxor.u32 %v1292, 2147483648
    %v1317 = vmul.f32 %v1316, 1.442695
    %v1318 = vpow.pop %v1317
    %v1319 = vadd.f32 %v1318, 1.0
    %v1320 = vrcp.pop %v1319
    %v1321 = vmul.f32 %v1319, %v1320
    %v1322 = vsub.f32 1.0, %v1321
    %v1323 = vmul.f32 %v1320, %v1322
    %v1324 = vadd.f32 %v1320, %v1323
    %vm1325 = vweird.f32 %v1319
    %vm1326 = vweird.f32 %v1320
    %vm1327 = vmor %vm1325, %vm1326
    %v1328 = vsel %vm1327, %v1320, %v1324
    %v1329 = vand.u32 2147483647, %v1319
    %vm1330 = vcmp.eq.f32.partialorder %v1329, 8.507059e+37
    %v1331 = vand.u32 %v1319, 2147483648
    %v1332 = vor.u32 1.1754944e-38, %v1331
    %v1333 = vsel %vm1330, %v1332, %v1328
    %v1334 = vmul.f32 1.0, %v1333
    %v1335 = vtanh.pop %v1315
    %v1336 = vmul.f32 %v1334, %v1335
    %v1337 = vld [vmem:[%s7] sm:$0xf]
    %v1338 = vld [vmem:[%s7 + $0x4] sm:$0xf]
    %v1339 = vld [vmem:[%s7 + $0x8] sm:$0xf]
    %v1340 = vld [vmem:[%s7 + $0xc] sm:$0xf]
    %v1341 = vld [vmem:[%s7 + $0x10] sm:$0xf]
    %v1342 = vld [vmem:[%s7 + $0x14] sm:$0xf]
    %v1343 = vld [vmem:[%s7 + $0x18] sm:$0xf]
    %v1344 = vld [vmem:[%s7 + $0x1c] sm:$0xf]
    %v1345 = vpack.c.bf16 %v1336, %v1336
    %v1346 = vld [vmem:[%s8] sm:$0x1]
    %v1348 = vperm.slane %v1346, 0
    %v1358 = vunpack.c.l.b16 %v1337
    %v1359 = vunpack.c.l.b16 %v1338
    %v1360 = vunpack.c.l.b16 %v1339
    %v1361 = vunpack.c.l.b16 %v1340
    %v1362 = vunpack.c.l.b16 %v1341
    %v1363 = vunpack.c.l.b16 %v1342
    %v1364 = vunpack.c.l.b16 %v1343
    %v1365 = vunpack.c.l.b16 %v1344
    %v1366 = vpack.c.b16 %v1359, %v1358
    %v1367 = vpack.c.b16 %v1361, %v1360
    %v1368 = vpack.c.b16 %v1363, %v1362
    %v1369 = vpack.c.b16 %v1365, %v1364
    %v1375 = vsel %vm979, %v1345, 0
    %1377 = vmatpush.bf16.msra.mxu0 0
    %1378 = vmatpush.bf16.msra.mxu0 0
    %1379 = vmatpush.bf16.msra.mxu0 0
    %1380 = vmatpush.bf16.msra.mxu0 0
    %1381 = vmatpush.bf16.msra.mxu0 %v1369
    %1382 = vmatpush.bf16.msra.mxu0 %v1368
    %1383 = vmatpush.bf16.msra.mxu0 %v1367
    %1384 = vmatpush.bf16.msra.mxu0 %v1366
    %1385 = vmatmul.bf16.gmra.mxu0 %v1375
    %v1386 = vpop.f32.mrf.mxu0
    %v1387 = vadd.f32 %v1348, %v1386
    %v1388 = vpop.f32.mrf.mxu0
    %1389 = vdwg.mxu0
    %vm1390 = vcmp.gt.f32.partialorder %v1387, 0.0
    %v1391 = vmul.f32 %v1387, 0.01
    %v1392 = vsel %vm1390, %v1387, %v1391
    %v1393 = vld [vmem:[%s9] sm:$0xf]
    %v1394 = vld [vmem:[%s9 + $0x4] sm:$0xf]
    %v1395 = vld [vmem:[%s9 + $0x8] sm:$0xf]
    %v1396 = vld [vmem:[%s9 + $0xc] sm:$0xf]
    %v1397 = vld [vmem:[%s9 + $0x10] sm:$0xf]
    %v1398 = vld [vmem:[%s9 + $0x14] sm:$0xf]
    %v1399 = vld [vmem:[%s9 + $0x18] sm:$0xf]
    %v1400 = vld [vmem:[%s9 + $0x1c] sm:$0xf]
    %v1401 = vpack.c.bf16 %v1392, %v1392
    %v1402 = vld [vmem:[%s10] sm:$0x1]
    %v1404 = vperm.slane %v1402, 0
    %v1414 = vunpack.c.l.b16 %v1393
    %v1415 = vunpack.c.l.b16 %v1394
    %v1416 = vunpack.c.l.b16 %v1395
    %v1417 = vunpack.c.l.b16 %v1396
    %v1418 = vunpack.c.l.b16 %v1397
    %v1419 = vunpack.c.l.b16 %v1398
    %v1420 = vunpack.c.l.b16 %v1399
    %v1421 = vunpack.c.l.b16 %v1400
    %v1422 = vpack.c.b16 %v1415, %v1414
    %v1423 = vpack.c.b16 %v1417, %v1416
    %v1424 = vpack.c.b16 %v1419, %v1418
    %v1425 = vpack.c.b16 %v1421, %v1420
    %v1431 = vsel %vm979, %v1401, 0
    %1433 = vmatpush.bf16.msra.mxu0 0
    %1434 = vmatpush.bf16.msra.mxu0 0
    %1435 = vmatpush.bf16.msra.mxu0 0
    %1436 = vmatpush.bf16.msra.mxu0 0
    %1437 = vmatpush.bf16.msra.mxu0 %v1425
    %1438 = vmatpush.bf16.msra.mxu0 %v1424
    %1439 = vmatpush.bf16.msra.mxu0 %v1423
    %1440 = vmatpush.bf16.msra.mxu0 %v1422
    %1441 = vmatmul.bf16.gmra.mxu0 %v1431
    %v1442 = vpop.f32.mrf.mxu0
    %v1443 = vadd.f32 %v1404, %v1442
    %v1444 = vpop.f32.mrf.mxu0
    %1445 = vdwg.mxu0
    %vm1446 = vcmp.gt.f32.partialorder %v1443, 0.0
    %v1447 = vmul.f32 %v1443, 0.01
    %v1448 = vsel %vm1446, %v1443, %v1447
    %v1449 = vld [vmem:[%s11] sm:$0xf]
    %v1450 = vld [vmem:[%s11 + $0x4] sm:$0xf]
    %v1451 = vld [vmem:[%s11 + $0x8] sm:$0xf]
    %v1452 = vld [vmem:[%s11 + $0xc] sm:$0xf]
    %v1453 = vld [vmem:[%s11 + $0x10] sm:$0xf]
    %v1454 = vld [vmem:[%s11 + $0x14] sm:$0xf]
    %v1455 = vld [vmem:[%s11 + $0x18] sm:$0xf]
    %v1456 = vld [vmem:[%s11 + $0x1c] sm:$0xf]
    %v1457 = vpack.c.bf16 %v1448, %v1448
    %v1458 = vld [vmem:[%s12] sm:$0x1]
    %v1460 = vperm.slane %v1458, 0
    %v1470 = vunpack.c.l.b16 %v1449
    %v1471 = vunpack.c.l.b16 %v1450
    %v1472 = vunpack.c.l.b16 %v1451
    %v1473 = vunpack.c.l.b16 %v1452
    %v1474 = vunpack.c.l.b16 %v1453
    %v1475 = vunpack.c.l.b16 %v1454
    %v1476 = vunpack.c.l.b16 %v1455
    %v1477 = vunpack.c.l.b16 %v1456
    %v1478 = vpack.c.b16 %v1471, %v1470
    %v1479 = vpack.c.b16 %v1473, %v1472
    %v1480 = vpack.c.b16 %v1475, %v1474
    %v1481 = vpack.c.b16 %v1477, %v1476
    %v1487 = vsel %vm979, %v1457, 0
    %1489 = vmatpush.bf16.msra.mxu0 0
    %1490 = vmatpush.bf16.msra.mxu0 0
    %1491 = vmatpush.bf16.msra.mxu0 0
    %1492 = vmatpush.bf16.msra.mxu0 0
    %1493 = vmatpush.bf16.msra.mxu0 %v1481
    %1494 = vmatpush.bf16.msra.mxu0 %v1480
    %1495 = vmatpush.bf16.msra.mxu0 %v1479
    %1496 = vmatpush.bf16.msra.mxu0 %v1478
    %1497 = vmatmul.bf16.gmra.mxu0 %v1487
    %v1498 = vpop.f32.mrf.mxu0
    %v1499 = vadd.f32 %v1460, %v1498
    %v1500 = vpop.f32.mrf.mxu0
    %1501 = vdwg.mxu0
    %v1502 = vmax.f32 %v1499, 0.0
    %v1503 = vld [vmem:[%s13] sm:$0xf]
    %v1504 = vld [vmem:[%s13 + $0x4] sm:$0xf]
    %v1505 = vld [vmem:[%s13 + $0x8] sm:$0xf]
    %v1506 = vld [vmem:[%s13 + $0xc] sm:$0xf]
    %v1507 = vld [vmem:[%s13 + $0x10] sm:$0xf]
    %v1508 = vld [vmem:[%s13 + $0x14] sm:$0xf]
    %v1509 = vld [vmem:[%s13 + $0x18] sm:$0xf]
    %v1510 = vld [vmem:[%s13 + $0x1c] sm:$0xf]
    %v1511 = vpack.c.bf16 %v1502, %v1502
    %v1512 = vld [vmem:[%s14] sm:$0x1]
    %v1514 = vperm.slane %v1512, 0
    %v1524 = vunpack.c.l.b16 %v1503
    %v1525 = vunpack.c.l.b16 %v1504
    %v1526 = vunpack.c.l.b16 %v1505
    %v1527 = vunpack.c.l.b16 %v1506
    %v1528 = vunpack.c.l.b16 %v1507
    %v1529 = vunpack.c.l.b16 %v1508
    %v1530 = vunpack.c.l.b16 %v1509
    %v1531 = vunpack.c.l.b16 %v1510
    %v1532 = vpack.c.b16 %v1525, %v1524
    %v1533 = vpack.c.b16 %v1527, %v1526
    %v1534 = vpack.c.b16 %v1529, %v1528
    %v1535 = vpack.c.b16 %v1531, %v1530
    %v1541 = vsel %vm979, %v1511, 0
    %1543 = vmatpush.bf16.msra.mxu0 0
    %1544 = vmatpush.bf16.msra.mxu0 0
    %1545 = vmatpush.bf16.msra.mxu0 0
    %1546 = vmatpush.bf16.msra.mxu0 0
    %1547 = vmatpush.bf16.msra.mxu0 %v1535
    %1548 = vmatpush.bf16.msra.mxu0 %v1534
    %1549 = vmatpush.bf16.msra.mxu0 %v1533
    %1550 = vmatpush.bf16.msra.mxu0 %v1532
    %1551 = vmatmul.bf16.gmra.mxu0 %v1541
    %v1552 = vpop.f32.mrf.mxu0
    %v1553 = vadd.f32 %v1514, %v1552
    %v1554 = vpop.f32.mrf.mxu0
    %1555 = vdwg.mxu0
    %v1556 = vmax.f32 %v1553, 0.0
    %v1557 = vld [vmem:[%s15] sm:$0xf]
    %v1558 = vld [vmem:[%s15 + $0x4] sm:$0xf]
    %v1559 = vld [vmem:[%s15 + $0x8] sm:$0xf]
    %v1560 = vld [vmem:[%s15 + $0xc] sm:$0xf]
    %v1561 = vld [vmem:[%s15 + $0x10] sm:$0xf]
    %v1562 = vld [vmem:[%s15 + $0x14] sm:$0xf]
    %v1563 = vld [vmem:[%s15 + $0x18] sm:$0xf]
    %v1564 = vld [vmem:[%s15 + $0x1c] sm:$0xf]
    %v1565 = vpack.c.bf16 %v1556, %v1556
    %v1566 = vld [vmem:[%s16] sm:$0x1]
    %v1568 = vperm.slane %v1566, 0
    %v1578 = vunpack.c.l.b16 %v1557
    %v1579 = vunpack.c.l.b16 %v1558
    %v1580 = vunpack.c.l.b16 %v1559
    %v1581 = vunpack.c.l.b16 %v1560
    %v1582 = vunpack.c.l.b16 %v1561
    %v1583 = vunpack.c.l.b16 %v1562
    %v1584 = vunpack.c.l.b16 %v1563
    %v1585 = vunpack.c.l.b16 %v1564
    %v1586 = vpack.c.b16 %v1579, %v1578
    %v1587 = vpack.c.b16 %v1581, %v1580
    %v1588 = vpack.c.b16 %v1583, %v1582
    %v1589 = vpack.c.b16 %v1585, %v1584
    %v1595 = vsel %vm979, %v1565, 0
    %1597 = vmatpush.bf16.msra.mxu0 0
    %1598 = vmatpush.bf16.msra.mxu0 0
    %1599 = vmatpush.bf16.msra.mxu0 0
    %1600 = vmatpush.bf16.msra.mxu0 0
    %1601 = vmatpush.bf16.msra.mxu0 %v1589
    %1602 = vmatpush.bf16.msra.mxu0 %v1588
    %1603 = vmatpush.bf16.msra.mxu0 %v1587
    %1604 = vmatpush.bf16.msra.mxu0 %v1586
    %1605 = vmatmul.bf16.gmra.mxu0 %v1595
    %v1606 = vpop.f32.mrf.mxu0
    %v1607 = vadd.f32 %v1568, %v1606
    %v1608 = vpop.f32.mrf.mxu0
    %1609 = vdwg.mxu0
    %1610 = vst [vmem:[#allocation2] sm:$0xff] %v1607
    // Predicated region
    $region70: #{tpu_custom_call.1} parent=1 // pred_check
      _
    $region71: #{tpu_custom_call.1} parent=1 // pred_check_branch
      %1612 = sbr.rel (0) target = $region73
    $region72: #{tpu_custom_call.1} parent=1 // pred_region
      %1614 = vsyncadd [#allocation3], 0
      %s1616 = sshll.u32 [#allocation2], 4
      %s1617 = int_to_ptr.vmem [resolvable:$true] %s1616
      %s1618 = sshll.u32 %s17, 4
      %s1619 = int_to_ptr.hbm [resolvable:$true] %s1618
      %1621 = dma.vmem_to_hbm [thread:$0]  %s1617, 128, %s1619, [#allocation3]
    $region73: #{tpu_custom_call.1} parent=1 // pred_fallthru
      _
    // Predicated region
    $region74: #{tpu_custom_call.1} parent=1 // pred_check
      _
    $region75: #{tpu_custom_call.1} parent=1 // pred_check_branch
      %1623 = sbr.rel (0) target = $region77
    $region76: #{tpu_custom_call.1} parent=1 // pred_region
      %1625 = dma.done [#allocation3], 128
    $region77: #{tpu_custom_call.1} parent=1 // pred_fallthru
      _
    %1626 = vsyncpa [#allocation3], 1

</llo_original>
